<compile_context>
chip_gen: v7x
topology: tpu7x:2x2x1
jax: 0.10.0
libtpu: 0.0.40
codegen_flags: <defaults>
</compile_context>

<pallas_src>
import jax
import jax.numpy as jnp
from jax.experimental import pallas as pl
from jax.experimental.pallas import tpu as pltpu

NUM_BOTTLENECK = 1000
MID = 500
BN_EPS = 1e-5

H1_PAD = 1024          # 1000 padded to a multiple of 128
H2_PAD = 512           # 500  padded to a multiple of 128
K_TILE = 2048          # K tile of the first matmul for very large in_ch
K_TILE_START = 4096    # start K-tiling W1 above this many padded input features


def _round_up(x, m):
    return ((x + m - 1) // m) * m


def _tpu_generation_info():
    """Best-effort (tensorcores_per_chip, per-core VMEM budget in bytes)."""
    kind = ""
    try:
        kind = jax.devices()[0].device_kind.lower()
    except Exception:
        pass
    cores = 2 if "v7" in kind else 1
    vmem = None
    try:
        vmem = int(getattr(pltpu.get_tpu_info(), "vmem_capacity_bytes", 0)) or None
    except Exception:
        vmem = None
    if not vmem:
        vmem = (64 if cores > 1 else 128) * 1024 * 1024
    if cores > 1:                       # v7x: 64 MiB per TensorCore
        vmem = min(vmem, 64 * 1024 * 1024)
    return cores, vmem


def _vmem_bytes_estimate(block_m, tk, out_pad, cdt_size):
    """Approximate VMEM working set (double-buffered blocks + scratch + temps)."""
    db = 2  # Pallas double-buffers every pipelined block
    b = 0
    b += db * block_m * tk * 4                      # x block (kept f32 in HBM)
    b += db * tk * H1_PAD * cdt_size                # W1 K tile
    b += db * H1_PAD * H2_PAD * cdt_size            # W2 (resident)
    b += db * H2_PAD * out_pad * cdt_size           # W3 (resident)
    b += db * 8 * (H1_PAD + H2_PAD + out_pad) * 4   # bias rows (sublane-padded)
    b += db * block_m * out_pad * 4                 # output block
    b += block_m * H1_PAD * 4                       # f32 accumulator scratch
    b += block_m * (H1_PAD + H2_PAD) * cdt_size     # h1 / h2 temporaries
    return b


def _pick_block_m(n_rows, *, num_cores, pack, tk, out_pad, cdt_size, vmem_budget):
    """Row-tile size.  Single-TC chips (v5e/v6e) keep one big block (the grid
    is a serial loop there, so splitting only adds per-step overhead); multi-TC
    chips (v7x) split the batch so both TensorCores get work.  Shrinks until
    the working set fits ~2/3 of the VMEM budget."""
    if n_rows <= 128:
        bm = _round_up(max(n_rows, 1), pack)
    elif num_cores > 1:
        bm = min(512, _round_up(-(-n_rows // num_cores), 128))
    else:
        bm = min(1024, _round_up(n_rows, 128))
    while bm > pack and _vmem_bytes_estimate(bm, tk, out_pad, cdt_size) > 0.66 * vmem_budget:
        bm = max(pack, _round_up(bm // 2, pack))
    return bm


def channel_compress_kernel(x_ref,
                            w1_ref, b1_ref,
                            w2_ref, b2_ref,
                            w3_ref, b3_ref,
                            o_ref, acc_ref):
    """One (block_m, tk) row tile x one K tile of the first matmul.

    Grid = (row blocks, K blocks).  The first matmul accumulates into a
    resident f32 VMEM scratch across the K axis; the rest of the chain (bias,
    ReLU, matmul 2 and 3, store) runs once on the last K step.  BatchNorm is
    pre-folded into the weights/biases; Dropout is identity (eval mode).
    """
    k = pl.program_id(1)

    @pl.when(k == 0)
    def _():
        acc_ref[...] = jnp.zeros_like(acc_ref)

    # In-kernel cast of the activations (input stays f32 in HBM).
    x = x_ref[...].astype(w1_ref.dtype)
    acc_ref[...] += jnp.dot(x, w1_ref[...], preferred_element_type=jnp.float32)

    @pl.when(k == pl.num_programs(1) - 1)
    def _():
        cdt = w2_ref.dtype
        # Bias add in f32, ReLU in the (bf16) compute dtype: half the vregs on
        # the bf16-native v6e/v7x VPU; max(., 0) commutes with the downcast so
        # the result is identical.
        h1 = jnp.maximum((acc_ref[...] + b1_ref[...]).astype(cdt), 0)
        # TODO(synk): train-mode stochastic dropout (pltpu.prng_*) not implemented.
        h2 = jnp.dot(h1, w2_ref[...], preferred_element_type=jnp.float32) + b2_ref[...]
        h2 = jnp.maximum(h2.astype(w3_ref.dtype), 0)
        o_ref[...] = (jnp.dot(h2, w3_ref[...], preferred_element_type=jnp.float32)
                      + b3_ref[...]).astype(o_ref.dtype)


def prepare_params(params, *, compute_dtype=jnp.bfloat16):
    """Fold BatchNorm into the Linear weights, zero-pad every feature dim to a
    lane-aligned multiple of 128 and cast to the MXU compute dtype.

    Call ONCE at model-load time and reuse the result for every forward call
    (this keeps all the weight re-reading/re-writing out of the per-call path).
    """
    in_ch = params["w1"].shape[0]
    out_ch = params["w3"].shape[1]

    # Fold BN (scale s, shift t):  ((x@w + b) * s + t)  ==  x @ (w*s) + (b*s + t)
    w1 = params["w1"] * params["s1"]
    b1 = params["b1"] * params["s1"] + params["t1"]
    w2 = params["w2"] * params["s2"]
    b2 = params["b2"] * params["s2"] + params["t2"]
    w3 = params["w3"]
    b3 = params["b3"]

    in_pad_128 = _round_up(in_ch, 128)
    if in_pad_128 <= K_TILE_START:
        in_pad, tk = in_pad_128, in_pad_128            # single K step (common case)
    else:
        in_pad, tk = _round_up(in_ch, K_TILE), K_TILE  # stream W1 in K tiles

    out_pad = _round_up(out_ch, 128)

    def pad2(a, rows, cols):
        return jnp.pad(a, ((0, rows - a.shape[0]), (0, cols - a.shape[1])))

    prepared = dict(
        w1=pad2(w1, in_pad, H1_PAD).astype(compute_dtype),
        b1=pad2(b1, 1, H1_PAD).astype(jnp.float32),
        w2=pad2(w2, H1_PAD, H2_PAD).astype(compute_dtype),
        b2=pad2(b2, 1, H2_PAD).astype(jnp.float32),
        w3=pad2(w3, H2_PAD, out_pad).astype(compute_dtype),
        b3=pad2(b3, 1, out_pad).astype(jnp.float32),
    )
    # TODO(synk): optional fp8 weight quantization (per-channel scales) for the v7x MXU.
    meta = dict(in_ch=in_ch, out_ch=out_ch, in_pad=in_pad, out_pad=out_pad,
                tk=tk, compute_dtype=jnp.dtype(compute_dtype))
    return prepared, meta


def channel_compress(x, prepared, meta, *, block_m=None):
    """ChannelCompress forward.  x: (N, in_ch) float32; (prepared, meta) from
    prepare_params().  If the model is invoked per-bag with tiny N, stack bags
    into one batch before calling — at N~16 a call is weight-DMA/latency bound."""
    N, in_ch = x.shape
    assert in_ch == meta["in_ch"], (in_ch, meta["in_ch"])

    in_pad, out_pad, tk = meta["in_pad"], meta["out_pad"], meta["tk"]
    out_ch = meta["out_ch"]
    cdt = meta["compute_dtype"]
    cdt_size = cdt.itemsize
    pack = 16 if cdt_size <= 2 else 8          # sublane packing of the compute dtype

    num_cores, vmem_budget = _tpu_generation_info()
    if block_m is None:
        block_m = _pick_block_m(N, num_cores=num_cores, pack=pack, tk=tk,
                                out_pad=out_pad, cdt_size=cdt_size,
                                vmem_budget=vmem_budget)
    n_pad = _round_up(N, block_m)

    est = _vmem_bytes_estimate(block_m, tk, out_pad, cdt_size)
    if est > vmem_budget:
        raise ValueError(
            f"ChannelCompress working set ~{est >> 20} MiB exceeds the "
            f"{vmem_budget >> 20} MiB VMEM budget; reduce block_m or K_TILE.")
    vmem_limit = int(min(vmem_budget, max(1.5 * est + (4 << 20), 32 << 20)))

    # Per-call input prep: only zero-pad x when needed; the compute-dtype cast
    # happens inside the kernel (no extra HBM pass over the activations).
    x_p = x
    if (n_pad, in_pad) != (N, in_ch):
        x_p = jnp.pad(x, ((0, n_pad - N), (0, in_pad - in_ch)))

    m_blocks = n_pad // block_m
    k_blocks = in_pad // tk
    grid = (m_blocks, k_blocks)

    # On multi-TensorCore chips (v7x) explicitly shard the batch axis across
    # cores; plain "parallel" is not guaranteed to engage both TCs.
    if num_cores > 1 and m_blocks >= num_cores and m_blocks % num_cores == 0:
        m_sem = pltpu.CORE_PARALLEL
    else:
        m_sem = pltpu.PARALLEL

    def resident(shape):
        # Weights / bias rows: same full block at every grid step (stay resident).
        return pl.BlockSpec(shape, lambda i, k: (0, 0))

    flops = 2 * n_pad * (in_pad * H1_PAD + H1_PAD * H2_PAD + H2_PAD * out_pad)
    bytes_accessed = (
        (in_pad * H1_PAD + H1_PAD * H2_PAD + H2_PAD * out_pad) * cdt_size  # weights
        + (H1_PAD + H2_PAD + out_pad) * 4                                  # biases
        + n_pad * in_pad * 4                                               # x (f32)
        + n_pad * out_pad * 4)                                             # out

    out = pl.pallas_call(
        channel_compress_kernel,
        out_shape=jax.ShapeDtypeStruct((n_pad, out_pad), jnp.float32),
        grid=grid,
        in_specs=[
            pl.BlockSpec((block_m, tk), lambda i, k: (i, k)),   # x row block / K tile
            pl.BlockSpec((tk, H1_PAD), lambda i, k: (k, 0)),    # W1 K tile (BN folded)
            resident((1, H1_PAD)),                              # b1 (BN folded)
            resident((H1_PAD, H2_PAD)),                         # W2 (BN folded)
            resident((1, H2_PAD)),                              # b2 (BN folded)
            resident((H2_PAD, out_pad)),                        # W3
            resident((1, out_pad)),                             # b3
        ],
        out_specs=pl.BlockSpec((block_m, out_pad), lambda i, k: (i, 0)),
        scratch_shapes=[pltpu.VMEM((block_m, H1_PAD), jnp.float32)],
        compiler_params=pltpu.CompilerParams(
            dimension_semantics=(m_sem, pltpu.ARBITRARY),
            vmem_limit_bytes=vmem_limit),
        cost_estimate=pl.CostEstimate(
            flops=int(flops), transcendentals=0,
            bytes_accessed=int(bytes_accessed)),
    )(x_p, prepared["w1"], prepared["b1"], prepared["w2"], prepared["b2"],
      prepared["w3"], prepared["b3"])

    return out[:N, :out_ch]


def init_params(key, in_ch, out_ch):
    """Deterministic parameter init mirroring PyTorch defaults.

    Linear: U(-1/sqrt(fan_in), 1/sqrt(fan_in)) for weight and bias.
    BatchNorm1d (eval): gamma=1, beta=0, running_mean=0, running_var=1,
    expressed as scale s = gamma / sqrt(var + eps), shift t = beta - mean * s.
    """
    keys = jax.random.split(key, 6)

    def linear(kw, kb, fan_in, fan_out):
        bound = 1.0 / jnp.sqrt(jnp.float32(fan_in))
        w = jax.random.uniform(kw, (fan_in, fan_out), jnp.float32, -bound, bound)
        b = jax.random.uniform(kb, (1, fan_out), jnp.float32, -bound, bound)
        return w, b

    def bn_fold(num_feat):
        gamma = jnp.ones((1, num_feat), jnp.float32)
        beta = jnp.zeros((1, num_feat), jnp.float32)
        running_mean = jnp.zeros((1, num_feat), jnp.float32)
        running_var = jnp.ones((1, num_feat), jnp.float32)
        s = gamma / jnp.sqrt(running_var + BN_EPS)
        t = beta - running_mean * s
        return s, t

    w1, b1 = linear(keys[0], keys[1], in_ch, NUM_BOTTLENECK)
    w2, b2 = linear(keys[2], keys[3], NUM_BOTTLENECK, MID)
    w3, b3 = linear(keys[4], keys[5], MID, out_ch)
    s1, t1 = bn_fold(NUM_BOTTLENECK)
    s2, t2 = bn_fold(MID)

    return dict(w1=w1, b1=b1, s1=s1, t1=t1,
                w2=w2, b2=b2, s2=s2, t2=t2,
                w3=w3, b3=b3)


def channel_compress_ref(x, p):
    """Pure-JAX f32 reference (unfolded BN) for correctness checking."""
    h1 = jnp.maximum((x @ p["w1"] + p["b1"]) * p["s1"] + p["t1"], 0.0)
    h2 = jnp.maximum((h1 @ p["w2"] + p["b2"]) * p["s2"] + p["t2"], 0.0)
    return h2 @ p["w3"] + p["b3"]


if __name__ == "__main__":
    IN_CH, OUT_CH, BATCH = 256, 64, 16

    key = jax.random.PRNGKey(0)
    k_x, k_p = jax.random.split(key)
    x = jax.random.normal(k_x, (BATCH, IN_CH), jnp.float32)
    params = init_params(k_p, IN_CH, OUT_CH)

    ref = channel_compress_ref(x, params)

    # Exact-precision path (f32 matmuls) — tight tolerance.
    prep32, meta32 = prepare_params(params, compute_dtype=jnp.float32)
    out_f32 = jax.block_until_ready(channel_compress(x, prep32, meta32))
    assert out_f32.shape == (BATCH, OUT_CH), out_f32.shape
    assert jnp.allclose(out_f32, ref, atol=1e-4, rtol=1e-4), \
        float(jnp.max(jnp.abs(out_f32 - ref)))

    # Default fast path (bf16 matmul operands, f32 accumulation).  Weights are
    # folded / padded / cast exactly once here and reused for every call.
    prep16, meta16 = prepare_params(params)
    out_bf16 = jax.block_until_ready(channel_compress(x, prep16, meta16))
    assert out_bf16.shape == (BATCH, OUT_CH), out_bf16.shape
    assert jnp.allclose(out_bf16, ref, atol=3e-2, rtol=3e-2), \
        float(jnp.max(jnp.abs(out_bf16 - ref)))

    print("KERNEL_OK")
</pallas_src>

<mosaic_0001>
module attributes {stable_mosaic.version = 11 : i64} {
  func.func @channel_compress_kernel(%arg0: i32, %arg1: i32, %arg2: memref<16x256xf32, #tpu.memory_space<vmem>>, %arg3: memref<256x1024xf32, #tpu.memory_space<vmem>>, %arg4: memref<1x1024xf32, #tpu.memory_space<vmem>>, %arg5: memref<1024x512xf32, #tpu.memory_space<vmem>>, %arg6: memref<1x512xf32, #tpu.memory_space<vmem>>, %arg7: memref<512x128xf32, #tpu.memory_space<vmem>>, %arg8: memref<1x128xf32, #tpu.memory_space<vmem>>, %arg9: memref<16x128xf32, #tpu.memory_space<vmem>>, %arg10: memref<16x1024xf32, #tpu.memory_space<vmem>>) attributes {dimension_semantics = [#tpu.dimension_semantics<parallel>, #tpu.dimension_semantics<arbitrary>], iteration_bounds = array<i64: 1, 1>, scalar_prefetch = 0 : i64, scratch_operands = 1 : i64, tpu.core_type = #tpu.core_type<tc>, window_params = [{transform_indices = @transform_0, window_bounds = array<i64: 16, 256>}, {transform_indices = @transform_1, window_bounds = array<i64: 256, 1024>}, {pipeline_mode = #tpu.pipeline_mode<synchronous>, transform_indices = @transform_2, window_bounds = array<i64: 1, 1024>}, {pipeline_mode = #tpu.pipeline_mode<synchronous>, transform_indices = @transform_3, window_bounds = array<i64: 1024, 512>}, {pipeline_mode = #tpu.pipeline_mode<synchronous>, transform_indices = @transform_4, window_bounds = array<i64: 1, 512>}, {pipeline_mode = #tpu.pipeline_mode<synchronous>, transform_indices = @transform_5, window_bounds = array<i64: 512, 128>}, {pipeline_mode = #tpu.pipeline_mode<synchronous>, transform_indices = @transform_6, window_bounds = array<i64: 1, 128>}, {transform_indices = @transform_7, window_bounds = array<i64: 16, 128>}]} {
    %c0_i32 = arith.constant 0 : i32
    %0 = arith.cmpi eq, %arg1, %c0_i32 : i32
    %1 = arith.extui %0 : i1 to i32
    %c0_i32_0 = arith.constant 0 : i32
    %2 = arith.cmpi ne, %1, %c0_i32_0 : i32
    scf.if %2 {
      %cst_10 = arith.constant 0.000000e+00 : f32
      %12 = vector.broadcast %cst_10 : f32 to vector<16x1024xf32>
      %c0_11 = arith.constant 0 : index
      %c0_12 = arith.constant 0 : index
      %13 = vector.load %arg10[%c0_11, %c0_12] : memref<16x1024xf32, #tpu.memory_space<vmem>>, vector<16x1024xf32>
      tpu.vector_store %arg10[%c0_11, %c0_12], %12 {strides = array<i32>} : memref<16x1024xf32, #tpu.memory_space<vmem>>, vector<16x1024xf32>,
    } else {
    }
    %c0 = arith.constant 0 : index
    %c0_1 = arith.constant 0 : index
    %3 = vector.load %arg2[%c0, %c0_1] : memref<16x256xf32, #tpu.memory_space<vmem>>, vector<16x256xf32>
    %c0_2 = arith.constant 0 : index
    %c0_3 = arith.constant 0 : index
    %4 = vector.load %arg10[%c0_2, %c0_3] : memref<16x1024xf32, #tpu.memory_space<vmem>>, vector<16x1024xf32>
    %c0_4 = arith.constant 0 : index
    %c0_5 = arith.constant 0 : index
    %5 = vector.load %arg3[%c0_4, %c0_5] : memref<256x1024xf32, #tpu.memory_space<vmem>>, vector<256x1024xf32>
    %cst = arith.constant dense<0.000000e+00> : vector<16x1024xf32>
    %6 = tpu.matmul %3, %5, %cst {dimension_numbers = #tpu.dot_dimension_numbers<[1], [0], [0], [1], [0, 0, 1, 1], [], []>} : vector<16x256xf32>, vector<256x1024xf32>, vector<16x1024xf32> -> vector<16x1024xf32>
    %7 = arith.addf %4, %6 : vector<16x1024xf32>
    %c0_6 = arith.constant 0 : index
    %c0_7 = arith.constant 0 : index
    %8 = vector.load %arg10[%c0_6, %c0_7] : memref<16x1024xf32, #tpu.memory_space<vmem>>, vector<16x1024xf32>
    tpu.vector_store %arg10[%c0_6, %c0_7], %7 {strides = array<i32>} : memref<16x1024xf32, #tpu.memory_space<vmem>>, vector<16x1024xf32>,
    %c0_i32_8 = arith.constant 0 : i32
    %9 = arith.cmpi eq, %arg1, %c0_i32_8 : i32
    %10 = arith.extui %9 : i1 to i32
    %c0_i32_9 = arith.constant 0 : i32
    %11 = arith.cmpi ne, %10, %c0_i32_9 : i32
    scf.if %11 {
      %c0_10 = arith.constant 0 : index
      %c0_11 = arith.constant 0 : index
      %12 = vector.load %arg10[%c0_10, %c0_11] : memref<16x1024xf32, #tpu.memory_space<vmem>>, vector<16x1024xf32>
      %c0_12 = arith.constant 0 : index
      %c0_13 = arith.constant 0 : index
      %13 = vector.load %arg4[%c0_12, %c0_13] : memref<1x1024xf32, #tpu.memory_space<vmem>>, vector<1x1024xf32>
      %14 = vector.broadcast %13 : vector<1x1024xf32> to vector<16x1024xf32>
      %15 = arith.addf %12, %14 : vector<16x1024xf32>
      %cst_14 = arith.constant 0.000000e+00 : f32
      %16 = vector.broadcast %cst_14 : f32 to vector<16x1024xf32>
      %17 = arith.maximumf %15, %16 : vector<16x1024xf32>
      %c0_15 = arith.constant 0 : index
      %c0_16 = arith.constant 0 : index
      %18 = vector.load %arg5[%c0_15, %c0_16] : memref<1024x512xf32, #tpu.memory_space<vmem>>, vector<1024x512xf32>
      %cst_17 = arith.constant dense<0.000000e+00> : vector<16x512xf32>
      %19 = tpu.matmul %17, %18, %cst_17 {dimension_numbers = #tpu.dot_dimension_numbers<[1], [0], [0], [1], [0, 0, 1, 1], [], []>} : vector<16x1024xf32>, vector<1024x512xf32>, vector<16x512xf32> -> vector<16x512xf32>
      %c0_18 = arith.constant 0 : index
      %c0_19 = arith.constant 0 : index
      %20 = vector.load %arg6[%c0_18, %c0_19] : memref<1x512xf32, #tpu.memory_space<vmem>>, vector<1x512xf32>
      %21 = vector.broadcast %20 : vector<1x512xf32> to vector<16x512xf32>
      %22 = arith.addf %19, %21 : vector<16x512xf32>
      %cst_20 = arith.constant 0.000000e+00 : f32
      %23 = vector.broadcast %cst_20 : f32 to vector<16x512xf32>
      %24 = arith.maximumf %22, %23 : vector<16x512xf32>
      %c0_21 = arith.constant 0 : index
      %c0_22 = arith.constant 0 : index
      %25 = vector.load %arg7[%c0_21, %c0_22] : memref<512x128xf32, #tpu.memory_space<vmem>>, vector<512x128xf32>
      %cst_23 = arith.constant dense<0.000000e+00> : vector<16x128xf32>
      %26 = tpu.matmul %24, %25, %cst_23 {dimension_numbers = #tpu.dot_dimension_numbers<[1], [0], [0], [1], [0, 0, 1, 1], [], []>} : vector<16x512xf32>, vector<512x128xf32>, vector<16x128xf32> -> vector<16x128xf32>
      %c0_24 = arith.constant 0 : index
      %c0_25 = arith.constant 0 : index
      %27 = vector.load %arg8[%c0_24, %c0_25] : memref<1x128xf32, #tpu.memory_space<vmem>>, vector<1x128xf32>
      %28 = vector.broadcast %27 : vector<1x128xf32> to vector<16x128xf32>
      %29 = arith.addf %26, %28 : vector<16x128xf32>
      %c0_26 = arith.constant 0 : index
      %c0_27 = arith.constant 0 : index
      %30 = vector.load %arg9[%c0_26, %c0_27] : memref<16x128xf32, #tpu.memory_space<vmem>>, vector<16x128xf32>
      tpu.vector_store %arg9[%c0_26, %c0_27], %29 {strides = array<i32>} : memref<16x128xf32, #tpu.memory_space<vmem>>, vector<16x128xf32>,
    } else {
    }
    return
  }
  func.func @transform_0(%arg0: i32, %arg1: i32) -> (i32, i32) {
    %c0_i32 = arith.constant 0 : i32
    return %arg0, %arg1 : i32, i32
  }
  func.func @transform_1(%arg0: i32, %arg1: i32) -> (i32, i32) {
    %c0_i32 = arith.constant 0 : i32
    %c0_i32_0 = arith.constant 0 : i32
    return %arg1, %c0_i32 : i32, i32
  }
  func.func @transform_2(%arg0: i32, %arg1: i32) -> (i32, i32) {
    %c0_i32 = arith.constant 0 : i32
    %c0_i32_0 = arith.constant 0 : i32
    %c0_i32_1 = arith.constant 0 : i32
    return %c0_i32, %c0_i32_0 : i32, i32
  }
  func.func @transform_3(%arg0: i32, %arg1: i32) -> (i32, i32) {
    %c0_i32 = arith.constant 0 : i32
    %c0_i32_0 = arith.constant 0 : i32
    %c0_i32_1 = arith.constant 0 : i32
    return %c0_i32, %c0_i32_0 : i32, i32
  }
  func.func @transform_4(%arg0: i32, %arg1: i32) -> (i32, i32) {
    %c0_i32 = arith.constant 0 : i32
    %c0_i32_0 = arith.constant 0 : i32
    %c0_i32_1 = arith.constant 0 : i32
    return %c0_i32, %c0_i32_0 : i32, i32
  }
  func.func @transform_5(%arg0: i32, %arg1: i32) -> (i32, i32) {
    %c0_i32 = arith.constant 0 : i32
    %c0_i32_0 = arith.constant 0 : i32
    %c0_i32_1 = arith.constant 0 : i32
    return %c0_i32, %c0_i32_0 : i32, i32
  }
  func.func @transform_6(%arg0: i32, %arg1: i32) -> (i32, i32) {
    %c0_i32 = arith.constant 0 : i32
    %c0_i32_0 = arith.constant 0 : i32
    %c0_i32_1 = arith.constant 0 : i32
    return %c0_i32, %c0_i32_0 : i32, i32
  }
  func.func @transform_7(%arg0: i32, %arg1: i32) -> (i32, i32) {
    %c0_i32 = arith.constant 0 : i32
    %c0_i32_0 = arith.constant 0 : i32
    return %arg0, %c0_i32 : i32, i32
  }
}

</mosaic_0001>

<llo_original>
// kernel: tpu_custom_call.1
$region0: #{tpu_custom_call.1}
  #allocation0 [shape = 'u32[]', space=smem, size = 0x4, offset = 0x4, fixed_abs, tag = 'smem constant byte address 0x4 - core index']
  #allocation1 [shape = 'u32[144,128]{1,0:T(1,128)}', space=vmem, size = 0x12000, scoped, tag = 'internal scratch']
  #allocation2 [shape = 'f32[16,1024]{1,0:T(8,128)}', space=vmem, size = 0x10000, scoped, tag = 'scratch operand']
  %s0 = inlined_call_operand.hbm [shape: f32[16,256], index: 0, kind: input, shape index: {}]
  %s1 = inlined_call_operand.hbm [shape: f32[256,1024], index: 1, kind: input, shape index: {}]
  %s2 = inlined_call_operand.hbm [shape: f32[1,1024], index: 2, kind: input, shape index: {}]
  %s3 = inlined_call_operand.hbm [shape: f32[1024,512], index: 3, kind: input, shape index: {}]
  %s4 = inlined_call_operand.hbm [shape: f32[1,512], index: 4, kind: input, shape index: {}]
  %s5 = inlined_call_operand.hbm [shape: f32[512,128], index: 5, kind: input, shape index: {}]
  %s6 = inlined_call_operand.hbm [shape: f32[1,128], index: 6, kind: input, shape index: {}]
  %s7 = inlined_call_operand.hbm [shape: f32[16,128], index: 7, kind: output, shape index: {}]
  %s8 = sld [smem:[#allocation0]]
  $region74: #{tpu_custom_call.1} parent=0
    _
  %s10 = ssub.s32 1, %s8
  %s11 = scalar_select 0, %s10, %s8
  $region1: #{tpu_custom_call.1} parent=0
    #allocation3 [shape = 'u8[16384]{0}', space=vmem, size = 0x4000, scoped, tag = 'input window, operand 0, single buffered']
    #allocation4 [shape = 's32[1]{0}', space=sflag, size = 0x4, scoped, tag = 'scoped memory for tpu_custom_call.1']
    #allocation5 [shape = 's32[1]{0}', space=sflag, size = 0x4, scoped, tag = 'scoped memory for tpu_custom_call.1']
    #allocation6 [shape = 'u8[1048576]{0}', space=vmem, size = 0x100000, scoped, tag = 'input window, operand 1, single buffered']
    #allocation7 [shape = 's32[1]{0}', space=sflag, size = 0x4, scoped, tag = 'scoped memory for tpu_custom_call.1']
    #allocation8 [shape = 'u8[4096]{0}', space=vmem, size = 0x1000, scoped, tag = 'input window, operand 2, single buffered']
    #allocation9 [shape = 'u8[2097152]{0}', space=vmem, size = 0x200000, scoped, tag = 'input window, operand 3, single buffered']
    #allocation10 [shape = 's32[1]{0}', space=sflag, size = 0x4, scoped, tag = 'scoped memory for tpu_custom_call.1']
    #allocation11 [shape = 'u8[2048]{0}', space=vmem, size = 0x800, scoped, tag = 'input window, operand 4, single buffered']
    #allocation12 [shape = 'u8[262144]{0}', space=vmem, size = 0x40000, scoped, tag = 'input window, operand 5, single buffered']
    #allocation13 [shape = 's32[1]{0}', space=sflag, size = 0x4, scoped, tag = 'scoped memory for tpu_custom_call.1']
    #allocation14 [shape = 'u8[512]{0}', space=vmem, size = 0x400, scoped, tag = 'input window, operand 6, single buffered']
    #allocation15 [shape = 'u8[8192]{0}', space=vmem, size = 0x2000, scoped, tag = 'output window, operand 0, single buffered']
    %12 = vsyncpa [#allocation4], 0
    %13 = vsyncpa [#allocation7], 0
    %14 = vsyncpa [#allocation10], 0
    %15 = vsyncpa [#allocation13], 0
    %16 = vsyncpa [#allocation5], 0
    // Predicated region
    $region2: #{tpu_custom_call.1} parent=1 // pred_check
      _
    $region3: #{tpu_custom_call.1} parent=1 // pred_check_branch
      %18 = sbr.rel (0) target = $region5
    $region4: #{tpu_custom_call.1} parent=1 // pred_region
      %s20 = ssub.s32 512, 512
      %21 = vsyncadd [#allocation4], %s20
      %s22 = sshll.u32 [#allocation3], 4
      %s23 = int_to_ptr.vmem [resolvable:$true] %s22
      %28 = dma.hbm_to_vmem [thread:$0]  %s0, 512, %s23, [#allocation4], 256, 256, 16
    $region5: #{tpu_custom_call.1} parent=1 // pred_fallthru
      _
    // Predicated region
    $region6: #{tpu_custom_call.1} parent=1 // pred_check
      _
    $region7: #{tpu_custom_call.1} parent=1 // pred_check_branch
      %30 = sbr.rel (0) target = $region9
    $region8: #{tpu_custom_call.1} parent=1 // pred_region
      %s32 = ssub.s32 32768, 32768
      %33 = vsyncadd [#allocation7], %s32
      %s34 = sshll.u32 [#allocation6], 4
      %s35 = int_to_ptr.vmem [resolvable:$true] %s34
      %40 = dma.hbm_to_vmem [thread:$0]  %s1, 32768, %s35, [#allocation7], 1024, 1024, 64
    $region9: #{tpu_custom_call.1} parent=1 // pred_fallthru
      _
    // Predicated region
    $region10: #{tpu_custom_call.1} parent=1 // pred_check
      _
    $region11: #{tpu_custom_call.1} parent=1 // pred_check_branch
      %42 = sbr.rel (0) target = $region13
    $region12: #{tpu_custom_call.1} parent=1 // pred_region
      %s44 = ssub.s32 128, 128
      %45 = vsyncadd [#allocation7], %s44
      %s47 = sshll.u32 [#allocation8], 4
      %s48 = int_to_ptr.vmem [resolvable:$true] %s47
      %50 = dma.hbm_to_vmem [thread:$0]  %s2, 128, %s48, [#allocation7]
    $region13: #{tpu_custom_call.1} parent=1 // pred_fallthru
      _
    // Predicated region
    $region14: #{tpu_custom_call.1} parent=1 // pred_check
      _
    $region15: #{tpu_custom_call.1} parent=1 // pred_check_branch
      %52 = sbr.rel (0) target = $region17
    $region16: #{tpu_custom_call.1} parent=1 // pred_region
      %s54 = ssub.s32 65536, 65536
      %55 = vsyncadd [#allocation10], %s54
      %s56 = sshll.u32 [#allocation9], 4
      %s57 = int_to_ptr.vmem [resolvable:$true] %s56
      %62 = dma.hbm_to_vmem [thread:$0]  %s3, 65536, %s57, [#allocation10], 512, 512, 32
    $region17: #{tpu_custom_call.1} parent=1 // pred_fallthru
      _
    // Predicated region
    $region18: #{tpu_custom_call.1} parent=1 // pred_check
      _
    $region19: #{tpu_custom_call.1} parent=1 // pred_check_branch
      %64 = sbr.rel (0) target = $region21
    $region20: #{tpu_custom_call.1} parent=1 // pred_region
      %s66 = ssub.s32 64, 64
      %67 = vsyncadd [#allocation10], %s66
      %s69 = sshll.u32 [#allocation11], 4
      %s70 = int_to_ptr.vmem [resolvable:$true] %s69
      %72 = dma.hbm_to_vmem [thread:$0]  %s4, 64, %s70, [#allocation10]
    $region21: #{tpu_custom_call.1} parent=1 // pred_fallthru
      _
    // Predicated region
    $region22: #{tpu_custom_call.1} parent=1 // pred_check
      _
    $region23: #{tpu_custom_call.1} parent=1 // pred_check_branch
      %74 = sbr.rel (0) target = $region25
    $region24: #{tpu_custom_call.1} parent=1 // pred_region
      %s76 = ssub.s32 8192, 8192
      %77 = vsyncadd [#allocation13], %s76
      %s78 = sshll.u32 [#allocation12], 4
      %s79 = int_to_ptr.vmem [resolvable:$true] %s78
      %84 = dma.hbm_to_vmem [thread:$0]  %s5, 8192, %s79, [#allocation13], 128, 128, 8
    $region25: #{tpu_custom_call.1} parent=1 // pred_fallthru
      _
    // Predicated region
    $region26: #{tpu_custom_call.1} parent=1 // pred_check
      _
    $region27: #{tpu_custom_call.1} parent=1 // pred_check_branch
      %86 = sbr.rel (0) target = $region29
    $region28: #{tpu_custom_call.1} parent=1 // pred_region
      %s88 = ssub.s32 16, 16
      %89 = vsyncadd [#allocation13], %s88
      %s91 = sshll.u32 [#allocation14], 4
      %s92 = int_to_ptr.vmem [resolvable:$true] %s91
      %94 = dma.hbm_to_vmem [thread:$0]  %s6, 16, %s92, [#allocation13]
    $region29: #{tpu_custom_call.1} parent=1 // pred_fallthru
      _
    // Predicated region
    $region30: #{tpu_custom_call.1} parent=1 // pred_check
      _
    $region31: #{tpu_custom_call.1} parent=1 // pred_check_branch
      %96 = sbr.rel (0) target = $region33
    $region32: #{tpu_custom_call.1} parent=1 // pred_region
      %97 = dma.done [#allocation4], 512
    $region33: #{tpu_custom_call.1} parent=1 // pred_fallthru
      _
    // Predicated region
    $region34: #{tpu_custom_call.1} parent=1 // pred_check
      _
    $region35: #{tpu_custom_call.1} parent=1 // pred_check_branch
      %99 = sbr.rel (0) target = $region37
    $region36: #{tpu_custom_call.1} parent=1 // pred_region
      %100 = dma.done [#allocation7], 32768
    $region37: #{tpu_custom_call.1} parent=1 // pred_fallthru
      _
    // Predicated region
    $region38: #{tpu_custom_call.1} parent=1 // pred_check
      _
    $region39: #{tpu_custom_call.1} parent=1 // pred_check_branch
      %102 = sbr.rel (0) target = $region41
    $region40: #{tpu_custom_call.1} parent=1 // pred_region
      %103 = dma.done [#allocation7], 128
    $region41: #{tpu_custom_call.1} parent=1 // pred_fallthru
      _
    // Predicated region
    $region42: #{tpu_custom_call.1} parent=1 // pred_check
      _
    $region43: #{tpu_custom_call.1} parent=1 // pred_check_branch
      %105 = sbr.rel (0) target = $region45
    $region44: #{tpu_custom_call.1} parent=1 // pred_region
      %106 = dma.done [#allocation10], 65536
    $region45: #{tpu_custom_call.1} parent=1 // pred_fallthru
      _
    // Predicated region
    $region46: #{tpu_custom_call.1} parent=1 // pred_check
      _
    $region47: #{tpu_custom_call.1} parent=1 // pred_check_branch
      %108 = sbr.rel (0) target = $region49
    $region48: #{tpu_custom_call.1} parent=1 // pred_region
      %109 = dma.done [#allocation10], 64
    $region49: #{tpu_custom_call.1} parent=1 // pred_fallthru
      _
    // Predicated region
    $region50: #{tpu_custom_call.1} parent=1 // pred_check
      _
    $region51: #{tpu_custom_call.1} parent=1 // pred_check_branch
      %111 = sbr.rel (0) target = $region53
    $region52: #{tpu_custom_call.1} parent=1 // pred_region
      %112 = dma.done [#allocation13], 8192
    $region53: #{tpu_custom_call.1} parent=1 // pred_fallthru
      _
    // Predicated region
    $region54: #{tpu_custom_call.1} parent=1 // pred_check
      _
    $region55: #{tpu_custom_call.1} parent=1 // pred_check_branch
      %114 = sbr.rel (0) target = $region57
    $region56: #{tpu_custom_call.1} parent=1 // pred_region
      %115 = dma.done [#allocation13], 16
    $region57: #{tpu_custom_call.1} parent=1 // pred_fallthru
      _
    %p116 = scmp.eq.s32.totalorder 0, 0
    // Predicated region
    $region58: #{tpu_custom_call.1} parent=1 // pred_check
      %p117 = pneg %p116
    $region59: #{tpu_custom_call.1} parent=1 // pred_check_branch
      %119 = sbr.rel (%p117) target = $region61
    $region60: #{tpu_custom_call.1} parent=1 // pred_region
      %120 = vst [vmem:[#allocation2] sm:$0xff] 0.0
      %121 = vst [vmem:[#allocation2 + $0x8] sm:$0xff] 0.0
      %122 = vst [vmem:[#allocation2 + $0x10] sm:$0xff] 0.0
      %123 = vst [vmem:[#allocation2 + $0x18] sm:$0xff] 0.0
      %124 = vst [vmem:[#allocation2 + $0x20] sm:$0xff] 0.0
      %125 = vst [vmem:[#allocation2 + $0x28] sm:$0xff] 0.0
      %126 = vst [vmem:[#allocation2 + $0x30] sm:$0xff] 0.0
      %127 = vst [vmem:[#allocation2 + $0x38] sm:$0xff] 0.0
      %128 = vst [vmem:[#allocation2 + $0x40] sm:$0xff] 0.0
      %129 = vst [vmem:[#allocation2 + $0x48] sm:$0xff] 0.0
      %130 = vst [vmem:[#allocation2 + $0x50] sm:$0xff] 0.0
      %131 = vst [vmem:[#allocation2 + $0x58] sm:$0xff] 0.0
      %132 = vst [vmem:[#allocation2 + $0x60] sm:$0xff] 0.0
      %133 = vst [vmem:[#allocation2 + $0x68] sm:$0xff] 0.0
      %134 = vst [vmem:[#allocation2 + $0x70] sm:$0xff] 0.0
      %135 = vst [vmem:[#allocation2 + $0x78] sm:$0xff] 0.0
    $region61: #{tpu_custom_call.1} parent=1 // pred_fallthru
      _
    %v136 = vld [vmem:[#allocation3] sm:$0xff]
    %v137 = vld [vmem:[#allocation3 + $0x8] sm:$0xff]
    %v138 = vld [vmem:[#allocation3 + $0x10] sm:$0xff]
    %v139 = vld [vmem:[#allocation3 + $0x18] sm:$0xff]
    %v140 = vld [vmem:[#allocation2] sm:$0xff]
    %v141 = vld [vmem:[#allocation2 + $0x8] sm:$0xff]
    %v142 = vld [vmem:[#allocation2 + $0x10] sm:$0xff]
    %v143 = vld [vmem:[#allocation2 + $0x18] sm:$0xff]
    %v144 = vld [vmem:[#allocation2 + $0x20] sm:$0xff]
    %v145 = vld [vmem:[#allocation2 + $0x28] sm:$0xff]
    %v146 = vld [vmem:[#allocation2 + $0x30] sm:$0xff]
    %v147 = vld [vmem:[#allocation2 + $0x38] sm:$0xff]
    %v148 = vld [vmem:[#allocation2 + $0x40] sm:$0xff]
    %v149 = vld [vmem:[#allocation2 + $0x48] sm:$0xff]
    %v150 = vld [vmem:[#allocation2 + $0x50] sm:$0xff]
    %v151 = vld [vmem:[#allocation2 + $0x58] sm:$0xff]
    %v152 = vld [vmem:[#allocation2 + $0x60] sm:$0xff]
    %v153 = vld [vmem:[#allocation2 + $0x68] sm:$0xff]
    %v154 = vld [vmem:[#allocation2 + $0x70] sm:$0xff]
    %v155 = vld [vmem:[#allocation2 + $0x78] sm:$0xff]
    %v156 = vld [vmem:[#allocation6] sm:$0xff]
    %v157 = vld [vmem:[#allocation6 + $0x8] sm:$0xff]
    %v158 = vld [vmem:[#allocation6 + $0x10] sm:$0xff]
    %v159 = vld [vmem:[#allocation6 + $0x18] sm:$0xff]
    %v160 = vld [vmem:[#allocation6 + $0x20] sm:$0xff]
    %v161 = vld [vmem:[#allocation6 + $0x28] sm:$0xff]
    %v162 = vld [vmem:[#allocation6 + $0x30] sm:$0xff]
    %v163 = vld [vmem:[#allocation6 + $0x38] sm:$0xff]
    %v164 = vld [vmem:[#allocation6 + $0x40] sm:$0xff]
    %v165 = vld [vmem:[#allocation6 + $0x48] sm:$0xff]
    %v166 = vld [vmem:[#allocation6 + $0x50] sm:$0xff]
    %v167 = vld [vmem:[#allocation6 + $0x58] sm:$0xff]
    %v168 = vld [vmem:[#allocation6 + $0x60] sm:$0xff]
    %v169 = vld [vmem:[#allocation6 + $0x68] sm:$0xff]
    %v170 = vld [vmem:[#allocation6 + $0x70] sm:$0xff]
    %v171 = vld [vmem:[#allocation6 + $0x78] sm:$0xff]
    %v172 = vld [vmem:[#allocation6 + $0x80] sm:$0xff]
    %v173 = vld [vmem:[#allocation6 + $0x88] sm:$0xff]
    %v174 = vld [vmem:[#allocation6 + $0x90] sm:$0xff]
    %v175 = vld [vmem:[#allocation6 + $0x98] sm:$0xff]
    %v176 = vld [vmem:[#allocation6 + $0xa0] sm:$0xff]
    %v177 = vld [vmem:[#allocation6 + $0xa8] sm:$0xff]
    %v178 = vld [vmem:[#allocation6 + $0xb0] sm:$0xff]
    %v179 = vld [vmem:[#allocation6 + $0xb8] sm:$0xff]
    %v180 = vld [vmem:[#allocation6 + $0xc0] sm:$0xff]
    %v181 = vld [vmem:[#allocation6 + $0xc8] sm:$0xff]
    %v182 = vld [vmem:[#allocation6 + $0xd0] sm:$0xff]
    %v183 = vld [vmem:[#allocation6 + $0xd8] sm:$0xff]
    %v184 = vld [vmem:[#allocation6 + $0xe0] sm:$0xff]
    %v185 = vld [vmem:[#allocation6 + $0xe8] sm:$0xff]
    %v186 = vld [vmem:[#allocation6 + $0xf0] sm:$0xff]
    %v187 = vld [vmem:[#allocation6 + $0xf8] sm:$0xff]
    %v188 = vld [vmem:[#allocation6 + $0x100] sm:$0xff]
    %v189 = vld [vmem:[#allocation6 + $0x108] sm:$0xff]
    %v190 = vld [vmem:[#allocation6 + $0x110] sm:$0xff]
    %v191 = vld [vmem:[#allocation6 + $0x118] sm:$0xff]
    %v192 = vld [vmem:[#allocation6 + $0x120] sm:$0xff]
    %v193 = vld [vmem:[#allocation6 + $0x128] sm:$0xff]
    %v194 = vld [vmem:[#allocation6 + $0x130] sm:$0xff]
    %v195 = vld [vmem:[#allocation6 + $0x138] sm:$0xff]
    %v196 = vld [vmem:[#allocation6 + $0x140] sm:$0xff]
    %v197 = vld [vmem:[#allocation6 + $0x148] sm:$0xff]
    %v198 = vld [vmem:[#allocation6 + $0x150] sm:$0xff]
    %v199 = vld [vmem:[#allocation6 + $0x158] sm:$0xff]
    %v200 = vld [vmem:[#allocation6 + $0x160] sm:$0xff]
    %v201 = vld [vmem:[#allocation6 + $0x168] sm:$0xff]
    %v202 = vld [vmem:[#allocation6 + $0x170] sm:$0xff]
    %v203 = vld [vmem:[#allocation6 + $0x178] sm:$0xff]
    %v204 = vld [vmem:[#allocation6 + $0x180] sm:$0xff]
    %v205 = vld [vmem:[#allocation6 + $0x188] sm:$0xff]
    %v206 = vld [vmem:[#allocation6 + $0x190] sm:$0xff]
    %v207 = vld [vmem:[#allocation6 + $0x198] sm:$0xff]
    %v208 = vld [vmem:[#allocation6 + $0x1a0] sm:$0xff]
    %v209 = vld [vmem:[#allocation6 + $0x1a8] sm:$0xff]
    %v210 = vld [vmem:[#allocation6 + $0x1b0] sm:$0xff]
    %v211 = vld [vmem:[#allocation6 + $0x1b8] sm:$0xff]
    %v212 = vld [vmem:[#allocation6 + $0x1c0] sm:$0xff]
    %v213 = vld [vmem:[#allocation6 + $0x1c8] sm:$0xff]
    %v214 = vld [vmem:[#allocation6 + $0x1d0] sm:$0xff]
    %v215 = vld [vmem:[#allocation6 + $0x1d8] sm:$0xff]
    %v216 = vld [vmem:[#allocation6 + $0x1e0] sm:$0xff]
    %v217 = vld [vmem:[#allocation6 + $0x1e8] sm:$0xff]
    %v218 = vld [vmem:[#allocation6 + $0x1f0] sm:$0xff]
    %v219 = vld [vmem:[#allocation6 + $0x1f8] sm:$0xff]
    %v220 = vld [vmem:[#allocation6 + $0x200] sm:$0xff]
    %v221 = vld [vmem:[#allocation6 + $0x208] sm:$0xff]
    %v222 = vld [vmem:[#allocation6 + $0x210] sm:$0xff]
    %v223 = vld [vmem:[#allocation6 + $0x218] sm:$0xff]
    %v224 = vld [vmem:[#allocation6 + $0x220] sm:$0xff]
    %v225 = vld [vmem:[#allocation6 + $0x228] sm:$0xff]
    %v226 = vld [vmem:[#allocation6 + $0x230] sm:$0xff]
    %v227 = vld [vmem:[#allocation6 + $0x238] sm:$0xff]
    %v228 = vld [vmem:[#allocation6 + $0x240] sm:$0xff]
    %v229 = vld [vmem:[#allocation6 + $0x248] sm:$0xff]
    %v230 = vld [vmem:[#allocation6 + $0x250] sm:$0xff]
    %v231 = vld [vmem:[#allocation6 + $0x258] sm:$0xff]
    %v232 = vld [vmem:[#allocation6 + $0x260] sm:$0xff]
    %v233 = vld [vmem:[#allocation6 + $0x268] sm:$0xff]
    %v234 = vld [vmem:[#allocation6 + $0x270] sm:$0xff]
    %v235 = vld [vmem:[#allocation6 + $0x278] sm:$0xff]
    %v236 = vld [vmem:[#allocation6 + $0x280] sm:$0xff]
    %v237 = vld [vmem:[#allocation6 + $0x288] sm:$0xff]
    %v238 = vld [vmem:[#allocation6 + $0x290] sm:$0xff]
    %v239 = vld [vmem:[#allocation6 + $0x298] sm:$0xff]
    %v240 = vld [vmem:[#allocation6 + $0x2a0] sm:$0xff]
    %v241 = vld [vmem:[#allocation6 + $0x2a8] sm:$0xff]
    %v242 = vld [vmem:[#allocation6 + $0x2b0] sm:$0xff]
    %v243 = vld [vmem:[#allocation6 + $0x2b8] sm:$0xff]
    %v244 = vld [vmem:[#allocation6 + $0x2c0] sm:$0xff]
    %v245 = vld [vmem:[#allocation6 + $0x2c8] sm:$0xff]
    %v246 = vld [vmem:[#allocation6 + $0x2d0] sm:$0xff]
    %v247 = vld [vmem:[#allocation6 + $0x2d8] sm:$0xff]
    %v248 = vld [vmem:[#allocation6 + $0x2e0] sm:$0xff]
    %v249 = vld [vmem:[#allocation6 + $0x2e8] sm:$0xff]
    %v250 = vld [vmem:[#allocation6 + $0x2f0] sm:$0xff]
    %v251 = vld [vmem:[#allocation6 + $0x2f8] sm:$0xff]
    %v252 = vld [vmem:[#allocation6 + $0x300] sm:$0xff]
    %v253 = vld [vmem:[#allocation6 + $0x308] sm:$0xff]
    %v254 = vld [vmem:[#allocation6 + $0x310] sm:$0xff]
    %v255 = vld [vmem:[#allocation6 + $0x318] sm:$0xff]
    %v256 = vld [vmem:[#allocation6 + $0x320] sm:$0xff]
    %v257 = vld [vmem:[#allocation6 + $0x328] sm:$0xff]
    %v258 = vld [vmem:[#allocation6 + $0x330] sm:$0xff]
    %v259 = vld [vmem:[#allocation6 + $0x338] sm:$0xff]
    %v260 = vld [vmem:[#allocation6 + $0x340] sm:$0xff]
    %v261 = vld [vmem:[#allocation6 + $0x348] sm:$0xff]
    %v262 = vld [vmem:[#allocation6 + $0x350] sm:$0xff]
    %v263 = vld [vmem:[#allocation6 + $0x358] sm:$0xff]
    %v264 = vld [vmem:[#allocation6 + $0x360] sm:$0xff]
    %v265 = vld [vmem:[#allocation6 + $0x368] sm:$0xff]
    %v266 = vld [vmem:[#allocation6 + $0x370] sm:$0xff]
    %v267 = vld [vmem:[#allocation6 + $0x378] sm:$0xff]
    %v268 = vld [vmem:[#allocation6 + $0x380] sm:$0xff]
    %v269 = vld [vmem:[#allocation6 + $0x388] sm:$0xff]
    %v270 = vld [vmem:[#allocation6 + $0x390] sm:$0xff]
    %v271 = vld [vmem:[#allocation6 + $0x398] sm:$0xff]
    %v272 = vld [vmem:[#allocation6 + $0x3a0] sm:$0xff]
    %v273 = vld [vmem:[#allocation6 + $0x3a8] sm:$0xff]
    %v274 = vld [vmem:[#allocation6 + $0x3b0] sm:$0xff]
    %v275 = vld [vmem:[#allocation6 + $0x3b8] sm:$0xff]
    %v276 = vld [vmem:[#allocation6 + $0x3c0] sm:$0xff]
    %v277 = vld [vmem:[#allocation6 + $0x3c8] sm:$0xff]
    %v278 = vld [vmem:[#allocation6 + $0x3d0] sm:$0xff]
    %v279 = vld [vmem:[#allocation6 + $0x3d8] sm:$0xff]
    %v280 = vld [vmem:[#allocation6 + $0x3e0] sm:$0xff]
    %v281 = vld [vmem:[#allocation6 + $0x3e8] sm:$0xff]
    %v282 = vld [vmem:[#allocation6 + $0x3f0] sm:$0xff]
    %v283 = vld [vmem:[#allocation6 + $0x3f8] sm:$0xff]
    %v284 = vld [vmem:[#allocation6 + $0x400] sm:$0xff]
    %v285 = vld [vmem:[#allocation6 + $0x408] sm:$0xff]
    %v286 = vld [vmem:[#allocation6 + $0x410] sm:$0xff]
    %v287 = vld [vmem:[#allocation6 + $0x418] sm:$0xff]
    %v288 = vld [vmem:[#allocation6 + $0x420] sm:$0xff]
    %v289 = vld [vmem:[#allocation6 + $0x428] sm:$0xff]
    %v290 = vld [vmem:[#allocation6 + $0x430] sm:$0xff]
    %v291 = vld [vmem:[#allocation6 + $0x438] sm:$0xff]
    %v292 = vld [vmem:[#allocation6 + $0x440] sm:$0xff]
    %v293 = vld [vmem:[#allocation6 + $0x448] sm:$0xff]
    %v294 = vld [vmem:[#allocation6 + $0x450] sm:$0xff]
    %v295 = vld [vmem:[#allocation6 + $0x458] sm:$0xff]
    %v296 = vld [vmem:[#allocation6 + $0x460] sm:$0xff]
    %v297 = vld [vmem:[#allocation6 + $0x468] sm:$0xff]
    %v298 = vld [vmem:[#allocation6 + $0x470] sm:$0xff]
    %v299 = vld [vmem:[#allocation6 + $0x478] sm:$0xff]
    %v300 = vld [vmem:[#allocation6 + $0x480] sm:$0xff]
    %v301 = vld [vmem:[#allocation6 + $0x488] sm:$0xff]
    %v302 = vld [vmem:[#allocation6 + $0x490] sm:$0xff]
    %v303 = vld [vmem:[#allocation6 + $0x498] sm:$0xff]
    %v304 = vld [vmem:[#allocation6 + $0x4a0] sm:$0xff]
    %v305 = vld [vmem:[#allocation6 + $0x4a8] sm:$0xff]
    %v306 = vld [vmem:[#allocation6 + $0x4b0] sm:$0xff]
    %v307 = vld [vmem:[#allocation6 + $0x4b8] sm:$0xff]
    %v308 = vld [vmem:[#allocation6 + $0x4c0] sm:$0xff]
    %v309 = vld [vmem:[#allocation6 + $0x4c8] sm:$0xff]
    %v310 = vld [vmem:[#allocation6 + $0x4d0] sm:$0xff]
    %v311 = vld [vmem:[#allocation6 + $0x4d8] sm:$0xff]
    %v312 = vld [vmem:[#allocation6 + $0x4e0] sm:$0xff]
    %v313 = vld [vmem:[#allocation6 + $0x4e8] sm:$0xff]
    %v314 = vld [vmem:[#allocation6 + $0x4f0] sm:$0xff]
    %v315 = vld [vmem:[#allocation6 + $0x4f8] sm:$0xff]
    %v316 = vld [vmem:[#allocation6 + $0x500] sm:$0xff]
    %v317 = vld [vmem:[#allocation6 + $0x508] sm:$0xff]
    %v318 = vld [vmem:[#allocation6 + $0x510] sm:$0xff]
    %v319 = vld [vmem:[#allocation6 + $0x518] sm:$0xff]
    %v320 = vld [vmem:[#allocation6 + $0x520] sm:$0xff]
    %v321 = vld [vmem:[#allocation6 + $0x528] sm:$0xff]
    %v322 = vld [vmem:[#allocation6 + $0x530] sm:$0xff]
    %v323 = vld [vmem:[#allocation6 + $0x538] sm:$0xff]
    %v324 = vld [vmem:[#allocation6 + $0x540] sm:$0xff]
    %v325 = vld [vmem:[#allocation6 + $0x548] sm:$0xff]
    %v326 = vld [vmem:[#allocation6 + $0x550] sm:$0xff]
    %v327 = vld [vmem:[#allocation6 + $0x558] sm:$0xff]
    %v328 = vld [vmem:[#allocation6 + $0x560] sm:$0xff]
    %v329 = vld [vmem:[#allocation6 + $0x568] sm:$0xff]
    %v330 = vld [vmem:[#allocation6 + $0x570] sm:$0xff]
    %v331 = vld [vmem:[#allocation6 + $0x578] sm:$0xff]
    %v332 = vld [vmem:[#allocation6 + $0x580] sm:$0xff]
    %v333 = vld [vmem:[#allocation6 + $0x588] sm:$0xff]
    %v334 = vld [vmem:[#allocation6 + $0x590] sm:$0xff]
    %v335 = vld [vmem:[#allocation6 + $0x598] sm:$0xff]
    %v336 = vld [vmem:[#allocation6 + $0x5a0] sm:$0xff]
    %v337 = vld [vmem:[#allocation6 + $0x5a8] sm:$0xff]
    %v338 = vld [vmem:[#allocation6 + $0x5b0] sm:$0xff]
    %v339 = vld [vmem:[#allocation6 + $0x5b8] sm:$0xff]
    %v340 = vld [vmem:[#allocation6 + $0x5c0] sm:$0xff]
    %v341 = vld [vmem:[#allocation6 + $0x5c8] sm:$0xff]
    %v342 = vld [vmem:[#allocation6 + $0x5d0] sm:$0xff]
    %v343 = vld [vmem:[#allocation6 + $0x5d8] sm:$0xff]
    %v344 = vld [vmem:[#allocation6 + $0x5e0] sm:$0xff]
    %v345 = vld [vmem:[#allocation6 + $0x5e8] sm:$0xff]
    %v346 = vld [vmem:[#allocation6 + $0x5f0] sm:$0xff]
    %v347 = vld [vmem:[#allocation6 + $0x5f8] sm:$0xff]
    %v348 = vld [vmem:[#allocation6 + $0x600] sm:$0xff]
    %v349 = vld [vmem:[#allocation6 + $0x608] sm:$0xff]
    %v350 = vld [vmem:[#allocation6 + $0x610] sm:$0xff]
    %v351 = vld [vmem:[#allocation6 + $0x618] sm:$0xff]
    %v352 = vld [vmem:[#allocation6 + $0x620] sm:$0xff]
    %v353 = vld [vmem:[#allocation6 + $0x628] sm:$0xff]
    %v354 = vld [vmem:[#allocation6 + $0x630] sm:$0xff]
    %v355 = vld [vmem:[#allocation6 + $0x638] sm:$0xff]
    %v356 = vld [vmem:[#allocation6 + $0x640] sm:$0xff]
    %v357 = vld [vmem:[#allocation6 + $0x648] sm:$0xff]
    %v358 = vld [vmem:[#allocation6 + $0x650] sm:$0xff]
    %v359 = vld [vmem:[#allocation6 + $0x658] sm:$0xff]
    %v360 = vld [vmem:[#allocation6 + $0x660] sm:$0xff]
    %v361 = vld [vmem:[#allocation6 + $0x668] sm:$0xff]
    %v362 = vld [vmem:[#allocation6 + $0x670] sm:$0xff]
    %v363 = vld [vmem:[#allocation6 + $0x678] sm:$0xff]
    %v364 = vld [vmem:[#allocation6 + $0x680] sm:$0xff]
    %v365 = vld [vmem:[#allocation6 + $0x688] sm:$0xff]
    %v366 = vld [vmem:[#allocation6 + $0x690] sm:$0xff]
    %v367 = vld [vmem:[#allocation6 + $0x698] sm:$0xff]
    %v368 = vld [vmem:[#allocation6 + $0x6a0] sm:$0xff]
    %v369 = vld [vmem:[#allocation6 + $0x6a8] sm:$0xff]
    %v370 = vld [vmem:[#allocation6 + $0x6b0] sm:$0xff]
    %v371 = vld [vmem:[#allocation6 + $0x6b8] sm:$0xff]
    %v372 = vld [vmem:[#allocation6 + $0x6c0] sm:$0xff]
    %v373 = vld [vmem:[#allocation6 + $0x6c8] sm:$0xff]
    %v374 = vld [vmem:[#allocation6 + $0x6d0] sm:$0xff]
    %v375 = vld [vmem:[#allocation6 + $0x6d8] sm:$0xff]
    %v376 = vld [vmem:[#allocation6 + $0x6e0] sm:$0xff]
    %v377 = vld [vmem:[#allocation6 + $0x6e8] sm:$0xff]
    %v378 = vld [vmem:[#allocation6 + $0x6f0] sm:$0xff]
    %v379 = vld [vmem:[#allocation6 + $0x6f8] sm:$0xff]
    %v380 = vld [vmem:[#allocation6 + $0x700] sm:$0xff]
    %v381 = vld [vmem:[#allocation6 + $0x708] sm:$0xff]
    %v382 = vld [vmem:[#allocation6 + $0x710] sm:$0xff]
    %v383 = vld [vmem:[#allocation6 + $0x718] sm:$0xff]
    %v384 = vld [vmem:[#allocation6 + $0x720] sm:$0xff]
    %v385 = vld [vmem:[#allocation6 + $0x728] sm:$0xff]
    %v386 = vld [vmem:[#allocation6 + $0x730] sm:$0xff]
    %v387 = vld [vmem:[#allocation6 + $0x738] sm:$0xff]
    %v388 = vld [vmem:[#allocation6 + $0x740] sm:$0xff]
    %v389 = vld [vmem:[#allocation6 + $0x748] sm:$0xff]
    %v390 = vld [vmem:[#allocation6 + $0x750] sm:$0xff]
    %v391 = vld [vmem:[#allocation6 + $0x758] sm:$0xff]
    %v392 = vld [vmem:[#allocation6 + $0x760] sm:$0xff]
    %v393 = vld [vmem:[#allocation6 + $0x768] sm:$0xff]
    %v394 = vld [vmem:[#allocation6 + $0x770] sm:$0xff]
    %v395 = vld [vmem:[#allocation6 + $0x778] sm:$0xff]
    %v396 = vld [vmem:[#allocation6 + $0x780] sm:$0xff]
    %v397 = vld [vmem:[#allocation6 + $0x788] sm:$0xff]
    %v398 = vld [vmem:[#allocation6 + $0x790] sm:$0xff]
    %v399 = vld [vmem:[#allocation6 + $0x798] sm:$0xff]
    %v400 = vld [vmem:[#allocation6 + $0x7a0] sm:$0xff]
    %v401 = vld [vmem:[#allocation6 + $0x7a8] sm:$0xff]
    %v402 = vld [vmem:[#allocation6 + $0x7b0] sm:$0xff]
    %v403 = vld [vmem:[#allocation6 + $0x7b8] sm:$0xff]
    %v404 = vld [vmem:[#allocation6 + $0x7c0] sm:$0xff]
    %v405 = vld [vmem:[#allocation6 + $0x7c8] sm:$0xff]
    %v406 = vld [vmem:[#allocation6 + $0x7d0] sm:$0xff]
    %v407 = vld [vmem:[#allocation6 + $0x7d8] sm:$0xff]
    %v408 = vld [vmem:[#allocation6 + $0x7e0] sm:$0xff]
    %v409 = vld [vmem:[#allocation6 + $0x7e8] sm:$0xff]
    %v410 = vld [vmem:[#allocation6 + $0x7f0] sm:$0xff]
    %v411 = vld [vmem:[#allocation6 + $0x7f8] sm:$0xff]
    %412 = vmatprep.subr.mxu0 %v157
    %413 = vmatpush1.msra.mxu0 %v156
    %414 = vmatprep.subr.mxu0 %v165
    %415 = vmatpush1.msra.mxu0 %v164
    %416 = vmatprep.subr.mxu0 %v173
    %417 = vmatpush1.msra.mxu0 %v172
    %418 = vmatprep.subr.mxu0 %v181
    %419 = vmatpush1.msra.mxu0 %v180
    %420 = vmatprep.subr.mxu0 %v189
    %421 = vmatpush1.msra.mxu0 %v188
    %422 = vmatprep.subr.mxu0 %v197
    %423 = vmatpush1.msra.mxu0 %v196
    %424 = vmatprep.subr.mxu0 %v205
    %425 = vmatpush1.msra.mxu0 %v204
    %426 = vmatprep.subr.mxu0 %v213
    %427 = vmatpush1.msra.mxu0 %v212
    %428 = vmatprep.subr.mxu0 %v221
    %429 = vmatpush1.msra.mxu0 %v220
    %430 = vmatprep.subr.mxu0 %v229
    %431 = vmatpush1.msra.mxu0 %v228
    %432 = vmatprep.subr.mxu0 %v237
    %433 = vmatpush1.msra.mxu0 %v236
    %434 = vmatprep.subr.mxu0 %v245
    %435 = vmatpush1.msra.mxu0 %v244
    %436 = vmatprep.subr.mxu0 %v253
    %437 = vmatpush1.msra.mxu0 %v252
    %438 = vmatprep.subr.mxu0 %v261
    %439 = vmatpush1.msra.mxu0 %v260
    %440 = vmatprep.subr.mxu0 %v269
    %441 = vmatpush1.msra.mxu0 %v268
    %442 = vmatprep.subr.mxu0 %v277
    %443 = vmatpush1.msra.mxu0 %v276
    %444 = vmatprep.subr.mxu0 %v285
    %445 = vmatpush1.msra.mxu0 %v284
    %446 = vmatprep.subr.mxu0 %v293
    %447 = vmatpush1.msra.mxu0 %v292
    %448 = vmatprep.subr.mxu0 %v301
    %449 = vmatpush1.msra.mxu0 %v300
    %450 = vmatprep.subr.mxu0 %v309
    %451 = vmatpush1.msra.mxu0 %v308
    %452 = vmatprep.subr.mxu0 %v317
    %453 = vmatpush1.msra.mxu0 %v316
    %454 = vmatprep.subr.mxu0 %v325
    %455 = vmatpush1.msra.mxu0 %v324
    %456 = vmatprep.subr.mxu0 %v333
    %457 = vmatpush1.msra.mxu0 %v332
    %458 = vmatprep.subr.mxu0 %v341
    %459 = vmatpush1.msra.mxu0 %v340
    %460 = vmatprep.subr.mxu0 %v349
    %461 = vmatpush1.msra.mxu0 %v348
    %462 = vmatprep.subr.mxu0 %v357
    %463 = vmatpush1.msra.mxu0 %v356
    %464 = vmatprep.subr.mxu0 %v365
    %465 = vmatpush1.msra.mxu0 %v364
    %466 = vmatprep.subr.mxu0 %v373
    %467 = vmatpush1.msra.mxu0 %v372
    %468 = vmatprep.subr.mxu0 %v381
    %469 = vmatpush1.msra.mxu0 %v380
    %470 = vmatprep.subr.mxu0 %v389
    %471 = vmatpush1.msra.mxu0 %v388
    %472 = vmatprep.subr.mxu0 %v397
    %473 = vmatpush1.msra.mxu0 %v396
    %474 = vmatprep.subr.mxu0 %v405
    %475 = vmatpush1.msra.mxu0 %v404
    %476 = vmatprep.mubr.f32.mxu0 %v137
    %477 = vmatmul.mubr.f32.gmra.mrb[0].mxu0 %v136
    %v478 = vpop.f32.mrb[0].mxu0
    %v479 = vadd.f32 0.0, %v478
    %v480 = vpop.f32.mrb[0].mxu0
    %v481 = vadd.f32 0.0, %v480
    %482 = vmatprep.mubr.f32.mxu0 %v139
    %483 = vmatmul.mubr.f32.gmra.mrb[0].mxu0 %v138
    %v484 = vpop.f32.mrb[0].mxu0
    %v485 = vadd.f32 0.0, %v484
    %v486 = vpop.f32.mrb[0].mxu0
    %v487 = vadd.f32 0.0, %v486
    %488 = vdwg.mxu0
    %489 = vmatprep.subr.mxu0 %v159
    %490 = vmatpush1.msra.mxu0 %v158
    %491 = vmatprep.subr.mxu0 %v167
    %492 = vmatpush1.msra.mxu0 %v166
    %493 = vmatprep.subr.mxu0 %v175
    %494 = vmatpush1.msra.mxu0 %v174
    %495 = vmatprep.subr.mxu0 %v183
    %496 = vmatpush1.msra.mxu0 %v182
    %497 = vmatprep.subr.mxu0 %v191
    %498 = vmatpush1.msra.mxu0 %v190
    %499 = vmatprep.subr.mxu0 %v199
    %500 = vmatpush1.msra.mxu0 %v198
    %501 = vmatprep.subr.mxu0 %v207
    %502 = vmatpush1.msra.mxu0 %v206
    %503 = vmatprep.subr.mxu0 %v215
    %504 = vmatpush1.msra.mxu0 %v214
    %505 = vmatprep.subr.mxu0 %v223
    %506 = vmatpush1.msra.mxu0 %v222
    %507 = vmatprep.subr.mxu0 %v231
    %508 = vmatpush1.msra.mxu0 %v230
    %509 = vmatprep.subr.mxu0 %v239
    %510 = vmatpush1.msra.mxu0 %v238
    %511 = vmatprep.subr.mxu0 %v247
    %512 = vmatpush1.msra.mxu0 %v246
    %513 = vmatprep.subr.mxu0 %v255
    %514 = vmatpush1.msra.mxu0 %v254
    %515 = vmatprep.subr.mxu0 %v263
    %516 = vmatpush1.msra.mxu0 %v262
    %517 = vmatprep.subr.mxu0 %v271
    %518 = vmatpush1.msra.mxu0 %v270
    %519 = vmatprep.subr.mxu0 %v279
    %520 = vmatpush1.msra.mxu0 %v278
    %521 = vmatprep.subr.mxu0 %v287
    %522 = vmatpush1.msra.mxu0 %v286
    %523 = vmatprep.subr.mxu0 %v295
    %524 = vmatpush1.msra.mxu0 %v294
    %525 = vmatprep.subr.mxu0 %v303
    %526 = vmatpush1.msra.mxu0 %v302
    %527 = vmatprep.subr.mxu0 %v311
    %528 = vmatpush1.msra.mxu0 %v310
    %529 = vmatprep.subr.mxu0 %v319
    %530 = vmatpush1.msra.mxu0 %v318
    %531 = vmatprep.subr.mxu0 %v327
    %532 = vmatpush1.msra.mxu0 %v326
    %533 = vmatprep.subr.mxu0 %v335
    %534 = vmatpush1.msra.mxu0 %v334
    %535 = vmatprep.subr.mxu0 %v343
    %536 = vmatpush1.msra.mxu0 %v342
    %537 = vmatprep.subr.mxu0 %v351
    %538 = vmatpush1.msra.mxu0 %v350
    %539 = vmatprep.subr.mxu0 %v359
    %540 = vmatpush1.msra.mxu0 %v358
    %541 = vmatprep.subr.mxu0 %v367
    %542 = vmatpush1.msra.mxu0 %v366
    %543 = vmatprep.subr.mxu0 %v375
    %544 = vmatpush1.msra.mxu0 %v374
    %545 = vmatprep.subr.mxu0 %v383
    %546 = vmatpush1.msra.mxu0 %v382
    %547 = vmatprep.subr.mxu0 %v391
    %548 = vmatpush1.msra.mxu0 %v390
    %549 = vmatprep.subr.mxu0 %v399
    %550 = vmatpush1.msra.mxu0 %v398
    %551 = vmatprep.subr.mxu0 %v407
    %552 = vmatpush1.msra.mxu0 %v406
    %553 = vmatprep.mubr.f32.mxu0 %v137
    %554 = vmatmul.mubr.f32.gmra.mrb[0].mxu0 %v136
    %v555 = vpop.f32.mrb[0].mxu0
    %v556 = vadd.f32 0.0, %v555
    %v557 = vpop.f32.mrb[0].mxu0
    %v558 = vadd.f32 0.0, %v557
    %559 = vmatprep.mubr.f32.mxu0 %v139
    %560 = vmatmul.mubr.f32.gmra.mrb[0].mxu0 %v138
    %v561 = vpop.f32.mrb[0].mxu0
    %v562 = vadd.f32 0.0, %v561
    %v563 = vpop.f32.mrb[0].mxu0
    %v564 = vadd.f32 0.0, %v563
    %565 = vdwg.mxu0
    %566 = vmatprep.subr.mxu0 %v161
    %567 = vmatpush1.msra.mxu0 %v160
    %568 = vmatprep.subr.mxu0 %v169
    %569 = vmatpush1.msra.mxu0 %v168
    %570 = vmatprep.subr.mxu0 %v177
    %571 = vmatpush1.msra.mxu0 %v176
    %572 = vmatprep.subr.mxu0 %v185
    %573 = vmatpush1.msra.mxu0 %v184
    %574 = vmatprep.subr.mxu0 %v193
    %575 = vmatpush1.msra.mxu0 %v192
    %576 = vmatprep.subr.mxu0 %v201
    %577 = vmatpush1.msra.mxu0 %v200
    %578 = vmatprep.subr.mxu0 %v209
    %579 = vmatpush1.msra.mxu0 %v208
    %580 = vmatprep.subr.mxu0 %v217
    %581 = vmatpush1.msra.mxu0 %v216
    %582 = vmatprep.subr.mxu0 %v225
    %583 = vmatpush1.msra.mxu0 %v224
    %584 = vmatprep.subr.mxu0 %v233
    %585 = vmatpush1.msra.mxu0 %v232
    %586 = vmatprep.subr.mxu0 %v241
    %587 = vmatpush1.msra.mxu0 %v240
    %588 = vmatprep.subr.mxu0 %v249
    %589 = vmatpush1.msra.mxu0 %v248
    %590 = vmatprep.subr.mxu0 %v257
    %591 = vmatpush1.msra.mxu0 %v256
    %592 = vmatprep.subr.mxu0 %v265
    %593 = vmatpush1.msra.mxu0 %v264
    %594 = vmatprep.subr.mxu0 %v273
    %595 = vmatpush1.msra.mxu0 %v272
    %596 = vmatprep.subr.mxu0 %v281
    %597 = vmatpush1.msra.mxu0 %v280
    %598 = vmatprep.subr.mxu0 %v289
    %599 = vmatpush1.msra.mxu0 %v288
    %600 = vmatprep.subr.mxu0 %v297
    %601 = vmatpush1.msra.mxu0 %v296
    %602 = vmatprep.subr.mxu0 %v305
    %603 = vmatpush1.msra.mxu0 %v304
    %604 = vmatprep.subr.mxu0 %v313
    %605 = vmatpush1.msra.mxu0 %v312
    %606 = vmatprep.subr.mxu0 %v321
    %607 = vmatpush1.msra.mxu0 %v320
    %608 = vmatprep.subr.mxu0 %v329
    %609 = vmatpush1.msra.mxu0 %v328
    %610 = vmatprep.subr.mxu0 %v337
    %611 = vmatpush1.msra.mxu0 %v336
    %612 = vmatprep.subr.mxu0 %v345
    %613 = vmatpush1.msra.mxu0 %v344
    %614 = vmatprep.subr.mxu0 %v353
    %615 = vmatpush1.msra.mxu0 %v352
    %616 = vmatprep.subr.mxu0 %v361
    %617 = vmatpush1.msra.mxu0 %v360
    %618 = vmatprep.subr.mxu0 %v369
    %619 = vmatpush1.msra.mxu0 %v368
    %620 = vmatprep.subr.mxu0 %v377
    %621 = vmatpush1.msra.mxu0 %v376
    %622 = vmatprep.subr.mxu0 %v385
    %623 = vmatpush1.msra.mxu0 %v384
    %624 = vmatprep.subr.mxu0 %v393
    %625 = vmatpush1.msra.mxu0 %v392
    %626 = vmatprep.subr.mxu0 %v401
    %627 = vmatpush1.msra.mxu0 %v400
    %628 = vmatprep.subr.mxu0 %v409
    %629 = vmatpush1.msra.mxu0 %v408
    %630 = vmatprep.mubr.f32.mxu0 %v137
    %631 = vmatmul.mubr.f32.gmra.mrb[0].mxu0 %v136
    %v632 = vpop.f32.mrb[0].mxu0
    %v633 = vadd.f32 0.0, %v632
    %v634 = vpop.f32.mrb[0].mxu0
    %v635 = vadd.f32 0.0, %v634
    %636 = vmatprep.mubr.f32.mxu0 %v139
    %637 = vmatmul.mubr.f32.gmra.mrb[0].mxu0 %v138
    %v638 = vpop.f32.mrb[0].mxu0
    %v639 = vadd.f32 0.0, %v638
    %v640 = vpop.f32.mrb[0].mxu0
    %v641 = vadd.f32 0.0, %v640
    %642 = vdwg.mxu0
    %643 = vmatprep.subr.mxu0 %v163
    %644 = vmatpush1.msra.mxu0 %v162
    %645 = vmatprep.subr.mxu0 %v171
    %646 = vmatpush1.msra.mxu0 %v170
    %647 = vmatprep.subr.mxu0 %v179
    %648 = vmatpush1.msra.mxu0 %v178
    %649 = vmatprep.subr.mxu0 %v187
    %650 = vmatpush1.msra.mxu0 %v186
    %651 = vmatprep.subr.mxu0 %v195
    %652 = vmatpush1.msra.mxu0 %v194
    %653 = vmatprep.subr.mxu0 %v203
    %654 = vmatpush1.msra.mxu0 %v202
    %655 = vmatprep.subr.mxu0 %v211
    %656 = vmatpush1.msra.mxu0 %v210
    %657 = vmatprep.subr.mxu0 %v219
    %658 = vmatpush1.msra.mxu0 %v218
    %659 = vmatprep.subr.mxu0 %v227
    %660 = vmatpush1.msra.mxu0 %v226
    %661 = vmatprep.subr.mxu0 %v235
    %662 = vmatpush1.msra.mxu0 %v234
    %663 = vmatprep.subr.mxu0 %v243
    %664 = vmatpush1.msra.mxu0 %v242
    %665 = vmatprep.subr.mxu0 %v251
    %666 = vmatpush1.msra.mxu0 %v250
    %667 = vmatprep.subr.mxu0 %v259
    %668 = vmatpush1.msra.mxu0 %v258
    %669 = vmatprep.subr.mxu0 %v267
    %670 = vmatpush1.msra.mxu0 %v266
    %671 = vmatprep.subr.mxu0 %v275
    %672 = vmatpush1.msra.mxu0 %v274
    %673 = vmatprep.subr.mxu0 %v283
    %674 = vmatpush1.msra.mxu0 %v282
    %675 = vmatprep.subr.mxu0 %v291
    %676 = vmatpush1.msra.mxu0 %v290
    %677 = vmatprep.subr.mxu0 %v299
    %678 = vmatpush1.msra.mxu0 %v298
    %679 = vmatprep.subr.mxu0 %v307
    %680 = vmatpush1.msra.mxu0 %v306
    %681 = vmatprep.subr.mxu0 %v315
    %682 = vmatpush1.msra.mxu0 %v314
    %683 = vmatprep.subr.mxu0 %v323
    %684 = vmatpush1.msra.mxu0 %v322
    %685 = vmatprep.subr.mxu0 %v331
    %686 = vmatpush1.msra.mxu0 %v330
    %687 = vmatprep.subr.mxu0 %v339
    %688 = vmatpush1.msra.mxu0 %v338
    %689 = vmatprep.subr.mxu0 %v347
    %690 = vmatpush1.msra.mxu0 %v346
    %691 = vmatprep.subr.mxu0 %v355
    %692 = vmatpush1.msra.mxu0 %v354
    %693 = vmatprep.subr.mxu0 %v363
    %694 = vmatpush1.msra.mxu0 %v362
    %695 = vmatprep.subr.mxu0 %v371
    %696 = vmatpush1.msra.mxu0 %v370
    %697 = vmatprep.subr.mxu0 %v379
    %698 = vmatpush1.msra.mxu0 %v378
    %699 = vmatprep.subr.mxu0 %v387
    %700 = vmatpush1.msra.mxu0 %v386
    %701 = vmatprep.subr.mxu0 %v395
    %702 = vmatpush1.msra.mxu0 %v394
    %703 = vmatprep.subr.mxu0 %v403
    %704 = vmatpush1.msra.mxu0 %v402
    %705 = vmatprep.subr.mxu0 %v411
    %706 = vmatpush1.msra.mxu0 %v410
    %707 = vmatprep.mubr.f32.mxu0 %v137
    %708 = vmatmul.mubr.f32.gmra.mrb[0].mxu0 %v136
    %v709 = vpop.f32.mrb[0].mxu0
    %v710 = vadd.f32 0.0, %v709
    %v711 = vpop.f32.mrb[0].mxu0
    %v712 = vadd.f32 0.0, %v711
    %713 = vmatprep.mubr.f32.mxu0 %v139
    %714 = vmatmul.mubr.f32.gmra.mrb[0].mxu0 %v138
    %v715 = vpop.f32.mrb[0].mxu0
    %v716 = vadd.f32 0.0, %v715
    %v717 = vpop.f32.mrb[0].mxu0
    %v718 = vadd.f32 0.0, %v717
    %719 = vdwg.mxu0
    %v720 = vadd.f32 %v140, %v479
    %v721 = vadd.f32 %v141, %v481
    %v722 = vadd.f32 %v142, %v556
    %v723 = vadd.f32 %v143, %v558
    %v724 = vadd.f32 %v144, %v633
    %v725 = vadd.f32 %v145, %v635
    %v726 = vadd.f32 %v146, %v710
    %v727 = vadd.f32 %v147, %v712
    %v728 = vadd.f32 %v148, %v485
    %v729 = vadd.f32 %v149, %v487
    %v730 = vadd.f32 %v150, %v562
    %v731 = vadd.f32 %v151, %v564
    %v732 = vadd.f32 %v152, %v639
    %v733 = vadd.f32 %v153, %v641
    %v734 = vadd.f32 %v154, %v716
    %v735 = vadd.f32 %v155, %v718
    %736 = vst [vmem:[#allocation2] sm:$0xff] %v720
    %737 = vst [vmem:[#allocation2 + $0x8] sm:$0xff] %v721
    %738 = vst [vmem:[#allocation2 + $0x10] sm:$0xff] %v722
    %739 = vst [vmem:[#allocation2 + $0x18] sm:$0xff] %v723
    %740 = vst [vmem:[#allocation2 + $0x20] sm:$0xff] %v724
    %741 = vst [vmem:[#allocation2 + $0x28] sm:$0xff] %v725
    %742 = vst [vmem:[#allocation2 + $0x30] sm:$0xff] %v726
    %743 = vst [vmem:[#allocation2 + $0x38] sm:$0xff] %v727
    %744 = vst [vmem:[#allocation2 + $0x40] sm:$0xff] %v728
    %745 = vst [vmem:[#allocation2 + $0x48] sm:$0xff] %v729
    %746 = vst [vmem:[#allocation2 + $0x50] sm:$0xff] %v730
    %747 = vst [vmem:[#allocation2 + $0x58] sm:$0xff] %v731
    %748 = vst [vmem:[#allocation2 + $0x60] sm:$0xff] %v732
    %749 = vst [vmem:[#allocation2 + $0x68] sm:$0xff] %v733
    %750 = vst [vmem:[#allocation2 + $0x70] sm:$0xff] %v734
    %751 = vst [vmem:[#allocation2 + $0x78] sm:$0xff] %v735
    // Predicated region
    $region62: #{tpu_custom_call.1} parent=1 // pred_check
      %p752 = pneg %p116
    $region63: #{tpu_custom_call.1} parent=1 // pred_check_branch
      %754 = sbr.rel (%p752) target = $region65
    $region64: #{tpu_custom_call.1} parent=1 // pred_region
      %v755 = vld [vmem:[#allocation2] sm:$0xff]
      %v756 = vld [vmem:[#allocation2 + $0x8] sm:$0xff]
      %v757 = vld [vmem:[#allocation2 + $0x10] sm:$0xff]
      %v758 = vld [vmem:[#allocation2 + $0x18] sm:$0xff]
      %v759 = vld [vmem:[#allocation2 + $0x20] sm:$0xff]
      %v760 = vld [vmem:[#allocation2 + $0x28] sm:$0xff]
      %v761 = vld [vmem:[#allocation2 + $0x30] sm:$0xff]
      %v762 = vld [vmem:[#allocation2 + $0x38] sm:$0xff]
      %v763 = vld [vmem:[#allocation2 + $0x40] sm:$0xff]
      %v764 = vld [vmem:[#allocation2 + $0x48] sm:$0xff]
      %v765 = vld [vmem:[#allocation2 + $0x50] sm:$0xff]
      %v766 = vld [vmem:[#allocation2 + $0x58] sm:$0xff]
      %v767 = vld [vmem:[#allocation2 + $0x60] sm:$0xff]
      %v768 = vld [vmem:[#allocation2 + $0x68] sm:$0xff]
      %v769 = vld [vmem:[#allocation2 + $0x70] sm:$0xff]
      %v770 = vld [vmem:[#allocation2 + $0x78] sm:$0xff]
      %v771 = vld [vmem:[#allocation8] sm:$0xff]
      %v773 = vlaneseq
      %v774 = vshrl.u32 %v773, 7
      %v775 = vsub.s32 0, %v774
      %v776 = vrot.slane %v771, %v775
      %v777 = vlaneseq
      %v778 = vshrl.u32 %v777, 7
      %v779 = vsub.s32 1, %v778
      %v780 = vrot.slane %v771, %v779
      %v781 = vlaneseq
      %v782 = vshrl.u32 %v781, 7
      %v783 = vsub.s32 2, %v782
      %v784 = vrot.slane %v771, %v783
      %v785 = vlaneseq
      %v786 = vshrl.u32 %v785, 7
      %v787 = vsub.s32 3, %v786
      %v788 = vrot.slane %v771, %v787
      %v789 = vlaneseq
      %v790 = vshrl.u32 %v789, 7
      %v791 = vsub.s32 4, %v790
      %v792 = vrot.slane %v771, %v791
      %v793 = vlaneseq
      %v794 = vshrl.u32 %v793, 7
      %v795 = vsub.s32 5, %v794
      %v796 = vrot.slane %v771, %v795
      %v797 = vlaneseq
      %v798 = vshrl.u32 %v797, 7
      %v799 = vsub.s32 6, %v798
      %v800 = vrot.slane %v771, %v799
      %v801 = vlaneseq
      %v802 = vshrl.u32 %v801, 7
      %v803 = vsub.s32 7, %v802
      %v804 = vrot.slane %v771, %v803
      %v813 = vadd.f32 %v755, %v776
      %v814 = vadd.f32 %v756, %v780
      %v815 = vadd.f32 %v757, %v784
      %v816 = vadd.f32 %v758, %v788
      %v817 = vadd.f32 %v759, %v792
      %v818 = vadd.f32 %v760, %v796
      %v819 = vadd.f32 %v761, %v800
      %v820 = vadd.f32 %v762, %v804
      %v821 = vadd.f32 %v763, %v776
      %v822 = vadd.f32 %v764, %v780
      %v823 = vadd.f32 %v765, %v784
      %v824 = vadd.f32 %v766, %v788
      %v825 = vadd.f32 %v767, %v792
      %v826 = vadd.f32 %v768, %v796
      %v827 = vadd.f32 %v769, %v800
      %v828 = vadd.f32 %v770, %v804
      %v829 = vmax.f32 %v813, 0.0
      %v830 = vmax.f32 %v814, 0.0
      %v831 = vmax.f32 %v815, 0.0
      %v832 = vmax.f32 %v816, 0.0
      %v833 = vmax.f32 %v817, 0.0
      %v834 = vmax.f32 %v818, 0.0
      %v835 = vmax.f32 %v819, 0.0
      %v836 = vmax.f32 %v820, 0.0
      %v837 = vmax.f32 %v821, 0.0
      %v838 = vmax.f32 %v822, 0.0
      %v839 = vmax.f32 %v823, 0.0
      %v840 = vmax.f32 %v824, 0.0
      %v841 = vmax.f32 %v825, 0.0
      %v842 = vmax.f32 %v826, 0.0
      %v843 = vmax.f32 %v827, 0.0
      %v844 = vmax.f32 %v828, 0.0
      %v845 = vld [vmem:[#allocation9] sm:$0xff]
      %v846 = vld [vmem:[#allocation9 + $0x8] sm:$0xff]
      %v847 = vld [vmem:[#allocation9 + $0x10] sm:$0xff]
      %v848 = vld [vmem:[#allocation9 + $0x18] sm:$0xff]
      %v849 = vld [vmem:[#allocation9 + $0x20] sm:$0xff]
      %v850 = vld [vmem:[#allocation9 + $0x28] sm:$0xff]
      %v851 = vld [vmem:[#allocation9 + $0x30] sm:$0xff]
      %v852 = vld [vmem:[#allocation9 + $0x38] sm:$0xff]
      %v853 = vld [vmem:[#allocation9 + $0x40] sm:$0xff]
      %v854 = vld [vmem:[#allocation9 + $0x48] sm:$0xff]
      %v855 = vld [vmem:[#allocation9 + $0x50] sm:$0xff]
      %v856 = vld [vmem:[#allocation9 + $0x58] sm:$0xff]
      %v857 = vld [vmem:[#allocation9 + $0x60] sm:$0xff]
      %v858 = vld [vmem:[#allocation9 + $0x68] sm:$0xff]
      %v859 = vld [vmem:[#allocation9 + $0x70] sm:$0xff]
      %v860 = vld [vmem:[#allocation9 + $0x78] sm:$0xff]
      %v861 = vld [vmem:[#allocation9 + $0x80] sm:$0xff]
      %v862 = vld [vmem:[#allocation9 + $0x88] sm:$0xff]
      %v863 = vld [vmem:[#allocation9 + $0x90] sm:$0xff]
      %v864 = vld [vmem:[#allocation9 + $0x98] sm:$0xff]
      %v865 = vld [vmem:[#allocation9 + $0xa0] sm:$0xff]
      %v866 = vld [vmem:[#allocation9 + $0xa8] sm:$0xff]
      %v867 = vld [vmem:[#allocation9 + $0xb0] sm:$0xff]
      %v868 = vld [vmem:[#allocation9 + $0xb8] sm:$0xff]
      %v869 = vld [vmem:[#allocation9 + $0xc0] sm:$0xff]
      %v870 = vld [vmem:[#allocation9 + $0xc8] sm:$0xff]
      %v871 = vld [vmem:[#allocation9 + $0xd0] sm:$0xff]
      %v872 = vld [vmem:[#allocation9 + $0xd8] sm:$0xff]
      %v873 = vld [vmem:[#allocation9 + $0xe0] sm:$0xff]
      %v874 = vld [vmem:[#allocation9 + $0xe8] sm:$0xff]
      %v875 = vld [vmem:[#allocation9 + $0xf0] sm:$0xff]
      %v876 = vld [vmem:[#allocation9 + $0xf8] sm:$0xff]
      %v877 = vld [vmem:[#allocation9 + $0x100] sm:$0xff]
      %v878 = vld [vmem:[#allocation9 + $0x108] sm:$0xff]
      %v879 = vld [vmem:[#allocation9 + $0x110] sm:$0xff]
      %v880 = vld [vmem:[#allocation9 + $0x118] sm:$0xff]
      %v881 = vld [vmem:[#allocation9 + $0x120] sm:$0xff]
      %v882 = vld [vmem:[#allocation9 + $0x128] sm:$0xff]
      %v883 = vld [vmem:[#allocation9 + $0x130] sm:$0xff]
      %v884 = vld [vmem:[#allocation9 + $0x138] sm:$0xff]
      %v885 = vld [vmem:[#allocation9 + $0x140] sm:$0xff]
      %v886 = vld [vmem:[#allocation9 + $0x148] sm:$0xff]
      %v887 = vld [vmem:[#allocation9 + $0x150] sm:$0xff]
      %v888 = vld [vmem:[#allocation9 + $0x158] sm:$0xff]
      %v889 = vld [vmem:[#allocation9 + $0x160] sm:$0xff]
      %v890 = vld [vmem:[#allocation9 + $0x168] sm:$0xff]
      %v891 = vld [vmem:[#allocation9 + $0x170] sm:$0xff]
      %v892 = vld [vmem:[#allocation9 + $0x178] sm:$0xff]
      %v893 = vld [vmem:[#allocation9 + $0x180] sm:$0xff]
      %v894 = vld [vmem:[#allocation9 + $0x188] sm:$0xff]
      %v895 = vld [vmem:[#allocation9 + $0x190] sm:$0xff]
      %v896 = vld [vmem:[#allocation9 + $0x198] sm:$0xff]
      %v897 = vld [vmem:[#allocation9 + $0x1a0] sm:$0xff]
      %v898 = vld [vmem:[#allocation9 + $0x1a8] sm:$0xff]
      %v899 = vld [vmem:[#allocation9 + $0x1b0] sm:$0xff]
      %v900 = vld [vmem:[#allocation9 + $0x1b8] sm:$0xff]
      %v901 = vld [vmem:[#allocation9 + $0x1c0] sm:$0xff]
      %v902 = vld [vmem:[#allocation9 + $0x1c8] sm:$0xff]
      %v903 = vld [vmem:[#allocation9 + $0x1d0] sm:$0xff]
      %v904 = vld [vmem:[#allocation9 + $0x1d8] sm:$0xff]
      %v905 = vld [vmem:[#allocation9 + $0x1e0] sm:$0xff]
      %v906 = vld [vmem:[#allocation9 + $0x1e8] sm:$0xff]
      %v907 = vld [vmem:[#allocation9 + $0x1f0] sm:$0xff]
      %v908 = vld [vmem:[#allocation9 + $0x1f8] sm:$0xff]
      %v909 = vld [vmem:[#allocation9 + $0x200] sm:$0xff]
      %v910 = vld [vmem:[#allocation9 + $0x208] sm:$0xff]
      %v911 = vld [vmem:[#allocation9 + $0x210] sm:$0xff]
      %v912 = vld [vmem:[#allocation9 + $0x218] sm:$0xff]
      %v913 = vld [vmem:[#allocation9 + $0x220] sm:$0xff]
      %v914 = vld [vmem:[#allocation9 + $0x228] sm:$0xff]
      %v915 = vld [vmem:[#allocation9 + $0x230] sm:$0xff]
      %v916 = vld [vmem:[#allocation9 + $0x238] sm:$0xff]
      %v917 = vld [vmem:[#allocation9 + $0x240] sm:$0xff]
      %v918 = vld [vmem:[#allocation9 + $0x248] sm:$0xff]
      %v919 = vld [vmem:[#allocation9 + $0x250] sm:$0xff]
      %v920 = vld [vmem:[#allocation9 + $0x258] sm:$0xff]
      %v921 = vld [vmem:[#allocation9 + $0x260] sm:$0xff]
      %v922 = vld [vmem:[#allocation9 + $0x268] sm:$0xff]
      %v923 = vld [vmem:[#allocation9 + $0x270] sm:$0xff]
      %v924 = vld [vmem:[#allocation9 + $0x278] sm:$0xff]
      %v925 = vld [vmem:[#allocation9 + $0x280] sm:$0xff]
      %v926 = vld [vmem:[#allocation9 + $0x288] sm:$0xff]
      %v927 = vld [vmem:[#allocation9 + $0x290] sm:$0xff]
      %v928 = vld [vmem:[#allocation9 + $0x298] sm:$0xff]
      %v929 = vld [vmem:[#allocation9 + $0x2a0] sm:$0xff]
      %v930 = vld [vmem:[#allocation9 + $0x2a8] sm:$0xff]
      %v931 = vld [vmem:[#allocation9 + $0x2b0] sm:$0xff]
      %v932 = vld [vmem:[#allocation9 + $0x2b8] sm:$0xff]
      %v933 = vld [vmem:[#allocation9 + $0x2c0] sm:$0xff]
      %v934 = vld [vmem:[#allocation9 + $0x2c8] sm:$0xff]
      %v935 = vld [vmem:[#allocation9 + $0x2d0] sm:$0xff]
      %v936 = vld [vmem:[#allocation9 + $0x2d8] sm:$0xff]
      %v937 = vld [vmem:[#allocation9 + $0x2e0] sm:$0xff]
      %v938 = vld [vmem:[#allocation9 + $0x2e8] sm:$0xff]
      %v939 = vld [vmem:[#allocation9 + $0x2f0] sm:$0xff]
      %v940 = vld [vmem:[#allocation9 + $0x2f8] sm:$0xff]
      %v941 = vld [vmem:[#allocation9 + $0x300] sm:$0xff]
      %v942 = vld [vmem:[#allocation9 + $0x308] sm:$0xff]
      %v943 = vld [vmem:[#allocation9 + $0x310] sm:$0xff]
      %v944 = vld [vmem:[#allocation9 + $0x318] sm:$0xff]
      %v945 = vld [vmem:[#allocation9 + $0x320] sm:$0xff]
      %v946 = vld [vmem:[#allocation9 + $0x328] sm:$0xff]
      %v947 = vld [vmem:[#allocation9 + $0x330] sm:$0xff]
      %v948 = vld [vmem:[#allocation9 + $0x338] sm:$0xff]
      %v949 = vld [vmem:[#allocation9 + $0x340] sm:$0xff]
      %v950 = vld [vmem:[#allocation9 + $0x348] sm:$0xff]
      %v951 = vld [vmem:[#allocation9 + $0x350] sm:$0xff]
      %v952 = vld [vmem:[#allocation9 + $0x358] sm:$0xff]
      %v953 = vld [vmem:[#allocation9 + $0x360] sm:$0xff]
      %v954 = vld [vmem:[#allocation9 + $0x368] sm:$0xff]
      %v955 = vld [vmem:[#allocation9 + $0x370] sm:$0xff]
      %v956 = vld [vmem:[#allocation9 + $0x378] sm:$0xff]
      %v957 = vld [vmem:[#allocation9 + $0x380] sm:$0xff]
      %v958 = vld [vmem:[#allocation9 + $0x388] sm:$0xff]
      %v959 = vld [vmem:[#allocation9 + $0x390] sm:$0xff]
      %v960 = vld [vmem:[#allocation9 + $0x398] sm:$0xff]
      %v961 = vld [vmem:[#allocation9 + $0x3a0] sm:$0xff]
      %v962 = vld [vmem:[#allocation9 + $0x3a8] sm:$0xff]
      %v963 = vld [vmem:[#allocation9 + $0x3b0] sm:$0xff]
      %v964 = vld [vmem:[#allocation9 + $0x3b8] sm:$0xff]
      %v965 = vld [vmem:[#allocation9 + $0x3c0] sm:$0xff]
      %v966 = vld [vmem:[#allocation9 + $0x3c8] sm:$0xff]
      %v967 = vld [vmem:[#allocation9 + $0x3d0] sm:$0xff]
      %v968 = vld [vmem:[#allocation9 + $0x3d8] sm:$0xff]
      %v969 = vld [vmem:[#allocation9 + $0x3e0] sm:$0xff]
      %v970 = vld [vmem:[#allocation9 + $0x3e8] sm:$0xff]
      %v971 = vld [vmem:[#allocation9 + $0x3f0] sm:$0xff]
      %v972 = vld [vmem:[#allocation9 + $0x3f8] sm:$0xff]
      %v973 = vld [vmem:[#allocation9 + $0x400] sm:$0xff]
      %v974 = vld [vmem:[#allocation9 + $0x408] sm:$0xff]
      %v975 = vld [vmem:[#allocation9 + $0x410] sm:$0xff]
      %v976 = vld [vmem:[#allocation9 + $0x418] sm:$0xff]
      %v977 = vld [vmem:[#allocation9 + $0x420] sm:$0xff]
      %v978 = vld [vmem:[#allocation9 + $0x428] sm:$0xff]
      %v979 = vld [vmem:[#allocation9 + $0x430] sm:$0xff]
      %v980 = vld [vmem:[#allocation9 + $0x438] sm:$0xff]
      %v981 = vld [vmem:[#allocation9 + $0x440] sm:$0xff]
      %v982 = vld [vmem:[#allocation9 + $0x448] sm:$0xff]
      %v983 = vld [vmem:[#allocation9 + $0x450] sm:$0xff]
      %v984 = vld [vmem:[#allocation9 + $0x458] sm:$0xff]
      %v985 = vld [vmem:[#allocation9 + $0x460] sm:$0xff]
      %v986 = vld [vmem:[#allocation9 + $0x468] sm:$0xff]
      %v987 = vld [vmem:[#allocation9 + $0x470] sm:$0xff]
      %v988 = vld [vmem:[#allocation9 + $0x478] sm:$0xff]
      %v989 = vld [vmem:[#allocation9 + $0x480] sm:$0xff]
      %v990 = vld [vmem:[#allocation9 + $0x488] sm:$0xff]
      %v991 = vld [vmem:[#allocation9 + $0x490] sm:$0xff]
      %v992 = vld [vmem:[#allocation9 + $0x498] sm:$0xff]
      %v993 = vld [vmem:[#allocation9 + $0x4a0] sm:$0xff]
      %v994 = vld [vmem:[#allocation9 + $0x4a8] sm:$0xff]
      %v995 = vld [vmem:[#allocation9 + $0x4b0] sm:$0xff]
      %v996 = vld [vmem:[#allocation9 + $0x4b8] sm:$0xff]
      %v997 = vld [vmem:[#allocation9 + $0x4c0] sm:$0xff]
      %v998 = vld [vmem:[#allocation9 + $0x4c8] sm:$0xff]
      %v999 = vld [vmem:[#allocation9 + $0x4d0] sm:$0xff]
      %v1000 = vld [vmem:[#allocation9 + $0x4d8] sm:$0xff]
      %v1001 = vld [vmem:[#allocation9 + $0x4e0] sm:$0xff]
      %v1002 = vld [vmem:[#allocation9 + $0x4e8] sm:$0xff]
      %v1003 = vld [vmem:[#allocation9 + $0x4f0] sm:$0xff]
      %v1004 = vld [vmem:[#allocation9 + $0x4f8] sm:$0xff]
      %v1005 = vld [vmem:[#allocation9 + $0x500] sm:$0xff]
      %v1006 = vld [vmem:[#allocation9 + $0x508] sm:$0xff]
      %v1007 = vld [vmem:[#allocation9 + $0x510] sm:$0xff]
      %v1008 = vld [vmem:[#allocation9 + $0x518] sm:$0xff]
      %v1009 = vld [vmem:[#allocation9 + $0x520] sm:$0xff]
      %v1010 = vld [vmem:[#allocation9 + $0x528] sm:$0xff]
      %v1011 = vld [vmem:[#allocation9 + $0x530] sm:$0xff]
      %v1012 = vld [vmem:[#allocation9 + $0x538] sm:$0xff]
      %v1013 = vld [vmem:[#allocation9 + $0x540] sm:$0xff]
      %v1014 = vld [vmem:[#allocation9 + $0x548] sm:$0xff]
      %v1015 = vld [vmem:[#allocation9 + $0x550] sm:$0xff]
      %v1016 = vld [vmem:[#allocation9 + $0x558] sm:$0xff]
      %v1017 = vld [vmem:[#allocation9 + $0x560] sm:$0xff]
      %v1018 = vld [vmem:[#allocation9 + $0x568] sm:$0xff]
      %v1019 = vld [vmem:[#allocation9 + $0x570] sm:$0xff]
      %v1020 = vld [vmem:[#allocation9 + $0x578] sm:$0xff]
      %v1021 = vld [vmem:[#allocation9 + $0x580] sm:$0xff]
      %v1022 = vld [vmem:[#allocation9 + $0x588] sm:$0xff]
      %v1023 = vld [vmem:[#allocation9 + $0x590] sm:$0xff]
      %v1024 = vld [vmem:[#allocation9 + $0x598] sm:$0xff]
      %v1025 = vld [vmem:[#allocation9 + $0x5a0] sm:$0xff]
      %v1026 = vld [vmem:[#allocation9 + $0x5a8] sm:$0xff]
      %v1027 = vld [vmem:[#allocation9 + $0x5b0] sm:$0xff]
      %v1028 = vld [vmem:[#allocation9 + $0x5b8] sm:$0xff]
      %v1029 = vld [vmem:[#allocation9 + $0x5c0] sm:$0xff]
      %v1030 = vld [vmem:[#allocation9 + $0x5c8] sm:$0xff]
      %v1031 = vld [vmem:[#allocation9 + $0x5d0] sm:$0xff]
      %v1032 = vld [vmem:[#allocation9 + $0x5d8] sm:$0xff]
      %v1033 = vld [vmem:[#allocation9 + $0x5e0] sm:$0xff]
      %v1034 = vld [vmem:[#allocation9 + $0x5e8] sm:$0xff]
      %v1035 = vld [vmem:[#allocation9 + $0x5f0] sm:$0xff]
      %v1036 = vld [vmem:[#allocation9 + $0x5f8] sm:$0xff]
      %v1037 = vld [vmem:[#allocation9 + $0x600] sm:$0xff]
      %v1038 = vld [vmem:[#allocation9 + $0x608] sm:$0xff]
      %v1039 = vld [vmem:[#allocation9 + $0x610] sm:$0xff]
      %v1040 = vld [vmem:[#allocation9 + $0x618] sm:$0xff]
      %v1041 = vld [vmem:[#allocation9 + $0x620] sm:$0xff]
      %v1042 = vld [vmem:[#allocation9 + $0x628] sm:$0xff]
      %v1043 = vld [vmem:[#allocation9 + $0x630] sm:$0xff]
      %v1044 = vld [vmem:[#allocation9 + $0x638] sm:$0xff]
      %v1045 = vld [vmem:[#allocation9 + $0x640] sm:$0xff]
      %v1046 = vld [vmem:[#allocation9 + $0x648] sm:$0xff]
      %v1047 = vld [vmem:[#allocation9 + $0x650] sm:$0xff]
      %v1048 = vld [vmem:[#allocation9 + $0x658] sm:$0xff]
      %v1049 = vld [vmem:[#allocation9 + $0x660] sm:$0xff]
      %v1050 = vld [vmem:[#allocation9 + $0x668] sm:$0xff]
      %v1051 = vld [vmem:[#allocation9 + $0x670] sm:$0xff]
      %v1052 = vld [vmem:[#allocation9 + $0x678] sm:$0xff]
      %v1053 = vld [vmem:[#allocation9 + $0x680] sm:$0xff]
      %v1054 = vld [vmem:[#allocation9 + $0x688] sm:$0xff]
      %v1055 = vld [vmem:[#allocation9 + $0x690] sm:$0xff]
      %v1056 = vld [vmem:[#allocation9 + $0x698] sm:$0xff]
      %v1057 = vld [vmem:[#allocation9 + $0x6a0] sm:$0xff]
      %v1058 = vld [vmem:[#allocation9 + $0x6a8] sm:$0xff]
      %v1059 = vld [vmem:[#allocation9 + $0x6b0] sm:$0xff]
      %v1060 = vld [vmem:[#allocation9 + $0x6b8] sm:$0xff]
      %v1061 = vld [vmem:[#allocation9 + $0x6c0] sm:$0xff]
      %v1062 = vld [vmem:[#allocation9 + $0x6c8] sm:$0xff]
      %v1063 = vld [vmem:[#allocation9 + $0x6d0] sm:$0xff]
      %v1064 = vld [vmem:[#allocation9 + $0x6d8] sm:$0xff]
      %v1065 = vld [vmem:[#allocation9 + $0x6e0] sm:$0xff]
      %v1066 = vld [vmem:[#allocation9 + $0x6e8] sm:$0xff]
      %v1067 = vld [vmem:[#allocation9 + $0x6f0] sm:$0xff]
      %v1068 = vld [vmem:[#allocation9 + $0x6f8] sm:$0xff]
      %v1069 = vld [vmem:[#allocation9 + $0x700] sm:$0xff]
      %v1070 = vld [vmem:[#allocation9 + $0x708] sm:$0xff]
      %v1071 = vld [vmem:[#allocation9 + $0x710] sm:$0xff]
      %v1072 = vld [vmem:[#allocation9 + $0x718] sm:$0xff]
      %v1073 = vld [vmem:[#allocation9 + $0x720] sm:$0xff]
      %v1074 = vld [vmem:[#allocation9 + $0x728] sm:$0xff]
      %v1075 = vld [vmem:[#allocation9 + $0x730] sm:$0xff]
      %v1076 = vld [vmem:[#allocation9 + $0x738] sm:$0xff]
      %v1077 = vld [vmem:[#allocation9 + $0x740] sm:$0xff]
      %v1078 = vld [vmem:[#allocation9 + $0x748] sm:$0xff]
      %v1079 = vld [vmem:[#allocation9 + $0x750] sm:$0xff]
      %v1080 = vld [vmem:[#allocation9 + $0x758] sm:$0xff]
      %v1081 = vld [vmem:[#allocation9 + $0x760] sm:$0xff]
      %v1082 = vld [vmem:[#allocation9 + $0x768] sm:$0xff]
      %v1083 = vld [vmem:[#allocation9 + $0x770] sm:$0xff]
      %v1084 = vld [vmem:[#allocation9 + $0x778] sm:$0xff]
      %v1085 = vld [vmem:[#allocation9 + $0x780] sm:$0xff]
      %v1086 = vld [vmem:[#allocation9 + $0x788] sm:$0xff]
      %v1087 = vld [vmem:[#allocation9 + $0x790] sm:$0xff]
      %v1088 = vld [vmem:[#allocation9 + $0x798] sm:$0xff]
      %v1089 = vld [vmem:[#allocation9 + $0x7a0] sm:$0xff]
      %v1090 = vld [vmem:[#allocation9 + $0x7a8] sm:$0xff]
      %v1091 = vld [vmem:[#allocation9 + $0x7b0] sm:$0xff]
      %v1092 = vld [vmem:[#allocation9 + $0x7b8] sm:$0xff]
      %v1093 = vld [vmem:[#allocation9 + $0x7c0] sm:$0xff]
      %v1094 = vld [vmem:[#allocation9 + $0x7c8] sm:$0xff]
      %v1095 = vld [vmem:[#allocation9 + $0x7d0] sm:$0xff]
      %v1096 = vld [vmem:[#allocation9 + $0x7d8] sm:$0xff]
      %v1097 = vld [vmem:[#allocation9 + $0x7e0] sm:$0xff]
      %v1098 = vld [vmem:[#allocation9 + $0x7e8] sm:$0xff]
      %v1099 = vld [vmem:[#allocation9 + $0x7f0] sm:$0xff]
      %v1100 = vld [vmem:[#allocation9 + $0x7f8] sm:$0xff]
      %v1101 = vld [vmem:[#allocation9 + $0x800] sm:$0xff]
      %v1102 = vld [vmem:[#allocation9 + $0x808] sm:$0xff]
      %v1103 = vld [vmem:[#allocation9 + $0x810] sm:$0xff]
      %v1104 = vld [vmem:[#allocation9 + $0x818] sm:$0xff]
      %v1105 = vld [vmem:[#allocation9 + $0x820] sm:$0xff]
      %v1106 = vld [vmem:[#allocation9 + $0x828] sm:$0xff]
      %v1107 = vld [vmem:[#allocation9 + $0x830] sm:$0xff]
      %v1108 = vld [vmem:[#allocation9 + $0x838] sm:$0xff]
      %v1109 = vld [vmem:[#allocation9 + $0x840] sm:$0xff]
      %v1110 = vld [vmem:[#allocation9 + $0x848] sm:$0xff]
      %v1111 = vld [vmem:[#allocation9 + $0x850] sm:$0xff]
      %v1112 = vld [vmem:[#allocation9 + $0x858] sm:$0xff]
      %v1113 = vld [vmem:[#allocation9 + $0x860] sm:$0xff]
      %v1114 = vld [vmem:[#allocation9 + $0x868] sm:$0xff]
      %v1115 = vld [vmem:[#allocation9 + $0x870] sm:$0xff]
      %v1116 = vld [vmem:[#allocation9 + $0x878] sm:$0xff]
      %v1117 = vld [vmem:[#allocation9 + $0x880] sm:$0xff]
      %v1118 = vld [vmem:[#allocation9 + $0x888] sm:$0xff]
      %v1119 = vld [vmem:[#allocation9 + $0x890] sm:$0xff]
      %v1120 = vld [vmem:[#allocation9 + $0x898] sm:$0xff]
      %v1121 = vld [vmem:[#allocation9 + $0x8a0] sm:$0xff]
      %v1122 = vld [vmem:[#allocation9 + $0x8a8] sm:$0xff]
      %v1123 = vld [vmem:[#allocation9 + $0x8b0] sm:$0xff]
      %v1124 = vld [vmem:[#allocation9 + $0x8b8] sm:$0xff]
      %v1125 = vld [vmem:[#allocation9 + $0x8c0] sm:$0xff]
      %v1126 = vld [vmem:[#allocation9 + $0x8c8] sm:$0xff]
      %v1127 = vld [vmem:[#allocation9 + $0x8d0] sm:$0xff]
      %v1128 = vld [vmem:[#allocation9 + $0x8d8] sm:$0xff]
      %v1129 = vld [vmem:[#allocation9 + $0x8e0] sm:$0xff]
      %v1130 = vld [vmem:[#allocation9 + $0x8e8] sm:$0xff]
      %v1131 = vld [vmem:[#allocation9 + $0x8f0] sm:$0xff]
      %v1132 = vld [vmem:[#allocation9 + $0x8f8] sm:$0xff]
      %v1133 = vld [vmem:[#allocation9 + $0x900] sm:$0xff]
      %v1134 = vld [vmem:[#allocation9 + $0x908] sm:$0xff]
      %v1135 = vld [vmem:[#allocation9 + $0x910] sm:$0xff]
      %v1136 = vld [vmem:[#allocation9 + $0x918] sm:$0xff]
      %v1137 = vld [vmem:[#allocation9 + $0x920] sm:$0xff]
      %v1138 = vld [vmem:[#allocation9 + $0x928] sm:$0xff]
      %v1139 = vld [vmem:[#allocation9 + $0x930] sm:$0xff]
      %v1140 = vld [vmem:[#allocation9 + $0x938] sm:$0xff]
      %v1141 = vld [vmem:[#allocation9 + $0x940] sm:$0xff]
      %v1142 = vld [vmem:[#allocation9 + $0x948] sm:$0xff]
      %v1143 = vld [vmem:[#allocation9 + $0x950] sm:$0xff]
      %v1144 = vld [vmem:[#allocation9 + $0x958] sm:$0xff]
      %v1145 = vld [vmem:[#allocation9 + $0x960] sm:$0xff]
      %v1146 = vld [vmem:[#allocation9 + $0x968] sm:$0xff]
      %v1147 = vld [vmem:[#allocation9 + $0x970] sm:$0xff]
      %v1148 = vld [vmem:[#allocation9 + $0x978] sm:$0xff]
      %v1149 = vld [vmem:[#allocation9 + $0x980] sm:$0xff]
      %v1150 = vld [vmem:[#allocation9 + $0x988] sm:$0xff]
      %v1151 = vld [vmem:[#allocation9 + $0x990] sm:$0xff]
      %v1152 = vld [vmem:[#allocation9 + $0x998] sm:$0xff]
      %v1153 = vld [vmem:[#allocation9 + $0x9a0] sm:$0xff]
      %v1154 = vld [vmem:[#allocation9 + $0x9a8] sm:$0xff]
      %v1155 = vld [vmem:[#allocation9 + $0x9b0] sm:$0xff]
      %v1156 = vld [vmem:[#allocation9 + $0x9b8] sm:$0xff]
      %v1157 = vld [vmem:[#allocation9 + $0x9c0] sm:$0xff]
      %v1158 = vld [vmem:[#allocation9 + $0x9c8] sm:$0xff]
      %v1159 = vld [vmem:[#allocation9 + $0x9d0] sm:$0xff]
      %v1160 = vld [vmem:[#allocation9 + $0x9d8] sm:$0xff]
      %v1161 = vld [vmem:[#allocation9 + $0x9e0] sm:$0xff]
      %v1162 = vld [vmem:[#allocation9 + $0x9e8] sm:$0xff]
      %v1163 = vld [vmem:[#allocation9 + $0x9f0] sm:$0xff]
      %v1164 = vld [vmem:[#allocation9 + $0x9f8] sm:$0xff]
      %v1165 = vld [vmem:[#allocation9 + $0xa00] sm:$0xff]
      %v1166 = vld [vmem:[#allocation9 + $0xa08] sm:$0xff]
      %v1167 = vld [vmem:[#allocation9 + $0xa10] sm:$0xff]
      %v1168 = vld [vmem:[#allocation9 + $0xa18] sm:$0xff]
      %v1169 = vld [vmem:[#allocation9 + $0xa20] sm:$0xff]
      %v1170 = vld [vmem:[#allocation9 + $0xa28] sm:$0xff]
      %v1171 = vld [vmem:[#allocation9 + $0xa30] sm:$0xff]
      %v1172 = vld [vmem:[#allocation9 + $0xa38] sm:$0xff]
      %v1173 = vld [vmem:[#allocation9 + $0xa40] sm:$0xff]
      %v1174 = vld [vmem:[#allocation9 + $0xa48] sm:$0xff]
      %v1175 = vld [vmem:[#allocation9 + $0xa50] sm:$0xff]
      %v1176 = vld [vmem:[#allocation9 + $0xa58] sm:$0xff]
      %v1177 = vld [vmem:[#allocation9 + $0xa60] sm:$0xff]
      %v1178 = vld [vmem:[#allocation9 + $0xa68] sm:$0xff]
      %v1179 = vld [vmem:[#allocation9 + $0xa70] sm:$0xff]
      %v1180 = vld [vmem:[#allocation9 + $0xa78] sm:$0xff]
      %v1181 = vld [vmem:[#allocation9 + $0xa80] sm:$0xff]
      %v1182 = vld [vmem:[#allocation9 + $0xa88] sm:$0xff]
      %v1183 = vld [vmem:[#allocation9 + $0xa90] sm:$0xff]
      %v1184 = vld [vmem:[#allocation9 + $0xa98] sm:$0xff]
      %v1185 = vld [vmem:[#allocation9 + $0xaa0] sm:$0xff]
      %v1186 = vld [vmem:[#allocation9 + $0xaa8] sm:$0xff]
      %v1187 = vld [vmem:[#allocation9 + $0xab0] sm:$0xff]
      %v1188 = vld [vmem:[#allocation9 + $0xab8] sm:$0xff]
      %v1189 = vld [vmem:[#allocation9 + $0xac0] sm:$0xff]
      %v1190 = vld [vmem:[#allocation9 + $0xac8] sm:$0xff]
      %v1191 = vld [vmem:[#allocation9 + $0xad0] sm:$0xff]
      %v1192 = vld [vmem:[#allocation9 + $0xad8] sm:$0xff]
      %v1193 = vld [vmem:[#allocation9 + $0xae0] sm:$0xff]
      %v1194 = vld [vmem:[#allocation9 + $0xae8] sm:$0xff]
      %v1195 = vld [vmem:[#allocation9 + $0xaf0] sm:$0xff]
      %v1196 = vld [vmem:[#allocation9 + $0xaf8] sm:$0xff]
      %v1197 = vld [vmem:[#allocation9 + $0xb00] sm:$0xff]
      %v1198 = vld [vmem:[#allocation9 + $0xb08] sm:$0xff]
      %v1199 = vld [vmem:[#allocation9 + $0xb10] sm:$0xff]
      %v1200 = vld [vmem:[#allocation9 + $0xb18] sm:$0xff]
      %v1201 = vld [vmem:[#allocation9 + $0xb20] sm:$0xff]
      %v1202 = vld [vmem:[#allocation9 + $0xb28] sm:$0xff]
      %v1203 = vld [vmem:[#allocation9 + $0xb30] sm:$0xff]
      %v1204 = vld [vmem:[#allocation9 + $0xb38] sm:$0xff]
      %v1205 = vld [vmem:[#allocation9 + $0xb40] sm:$0xff]
      %v1206 = vld [vmem:[#allocation9 + $0xb48] sm:$0xff]
      %v1207 = vld [vmem:[#allocation9 + $0xb50] sm:$0xff]
      %v1208 = vld [vmem:[#allocation9 + $0xb58] sm:$0xff]
      %v1209 = vld [vmem:[#allocation9 + $0xb60] sm:$0xff]
      %v1210 = vld [vmem:[#allocation9 + $0xb68] sm:$0xff]
      %v1211 = vld [vmem:[#allocation9 + $0xb70] sm:$0xff]
      %v1212 = vld [vmem:[#allocation9 + $0xb78] sm:$0xff]
      %v1213 = vld [vmem:[#allocation9 + $0xb80] sm:$0xff]
      %v1214 = vld [vmem:[#allocation9 + $0xb88] sm:$0xff]
      %v1215 = vld [vmem:[#allocation9 + $0xb90] sm:$0xff]
      %v1216 = vld [vmem:[#allocation9 + $0xb98] sm:$0xff]
      %v1217 = vld [vmem:[#allocation9 + $0xba0] sm:$0xff]
      %v1218 = vld [vmem:[#allocation9 + $0xba8] sm:$0xff]
      %v1219 = vld [vmem:[#allocation9 + $0xbb0] sm:$0xff]
      %v1220 = vld [vmem:[#allocation9 + $0xbb8] sm:$0xff]
      %v1221 = vld [vmem:[#allocation9 + $0xbc0] sm:$0xff]
      %v1222 = vld [vmem:[#allocation9 + $0xbc8] sm:$0xff]
      %v1223 = vld [vmem:[#allocation9 + $0xbd0] sm:$0xff]
      %v1224 = vld [vmem:[#allocation9 + $0xbd8] sm:$0xff]
      %v1225 = vld [vmem:[#allocation9 + $0xbe0] sm:$0xff]
      %v1226 = vld [vmem:[#allocation9 + $0xbe8] sm:$0xff]
      %v1227 = vld [vmem:[#allocation9 + $0xbf0] sm:$0xff]
      %v1228 = vld [vmem:[#allocation9 + $0xbf8] sm:$0xff]
      %v1229 = vld [vmem:[#allocation9 + $0xc00] sm:$0xff]
      %v1230 = vld [vmem:[#allocation9 + $0xc08] sm:$0xff]
      %v1231 = vld [vmem:[#allocation9 + $0xc10] sm:$0xff]
      %v1232 = vld [vmem:[#allocation9 + $0xc18] sm:$0xff]
      %v1233 = vld [vmem:[#allocation9 + $0xc20] sm:$0xff]
      %v1234 = vld [vmem:[#allocation9 + $0xc28] sm:$0xff]
      %v1235 = vld [vmem:[#allocation9 + $0xc30] sm:$0xff]
      %v1236 = vld [vmem:[#allocation9 + $0xc38] sm:$0xff]
      %v1237 = vld [vmem:[#allocation9 + $0xc40] sm:$0xff]
      %v1238 = vld [vmem:[#allocation9 + $0xc48] sm:$0xff]
      %v1239 = vld [vmem:[#allocation9 + $0xc50] sm:$0xff]
      %v1240 = vld [vmem:[#allocation9 + $0xc58] sm:$0xff]
      %v1241 = vld [vmem:[#allocation9 + $0xc60] sm:$0xff]
      %v1242 = vld [vmem:[#allocation9 + $0xc68] sm:$0xff]
      %v1243 = vld [vmem:[#allocation9 + $0xc70] sm:$0xff]
      %v1244 = vld [vmem:[#allocation9 + $0xc78] sm:$0xff]
      %v1245 = vld [vmem:[#allocation9 + $0xc80] sm:$0xff]
      %v1246 = vld [vmem:[#allocation9 + $0xc88] sm:$0xff]
      %v1247 = vld [vmem:[#allocation9 + $0xc90] sm:$0xff]
      %v1248 = vld [vmem:[#allocation9 + $0xc98] sm:$0xff]
      %v1249 = vld [vmem:[#allocation9 + $0xca0] sm:$0xff]
      %v1250 = vld [vmem:[#allocation9 + $0xca8] sm:$0xff]
      %v1251 = vld [vmem:[#allocation9 + $0xcb0] sm:$0xff]
      %v1252 = vld [vmem:[#allocation9 + $0xcb8] sm:$0xff]
      %v1253 = vld [vmem:[#allocation9 + $0xcc0] sm:$0xff]
      %v1254 = vld [vmem:[#allocation9 + $0xcc8] sm:$0xff]
      %v1255 = vld [vmem:[#allocation9 + $0xcd0] sm:$0xff]
      %v1256 = vld [vmem:[#allocation9 + $0xcd8] sm:$0xff]
      %v1257 = vld [vmem:[#allocation9 + $0xce0] sm:$0xff]
      %v1258 = vld [vmem:[#allocation9 + $0xce8] sm:$0xff]
      %v1259 = vld [vmem:[#allocation9 + $0xcf0] sm:$0xff]
      %v1260 = vld [vmem:[#allocation9 + $0xcf8] sm:$0xff]
      %v1261 = vld [vmem:[#allocation9 + $0xd00] sm:$0xff]
      %v1262 = vld [vmem:[#allocation9 + $0xd08] sm:$0xff]
      %v1263 = vld [vmem:[#allocation9 + $0xd10] sm:$0xff]
      %v1264 = vld [vmem:[#allocation9 + $0xd18] sm:$0xff]
      %v1265 = vld [vmem:[#allocation9 + $0xd20] sm:$0xff]
      %v1266 = vld [vmem:[#allocation9 + $0xd28] sm:$0xff]
      %v1267 = vld [vmem:[#allocation9 + $0xd30] sm:$0xff]
      %v1268 = vld [vmem:[#allocation9 + $0xd38] sm:$0xff]
      %v1269 = vld [vmem:[#allocation9 + $0xd40] sm:$0xff]
      %v1270 = vld [vmem:[#allocation9 + $0xd48] sm:$0xff]
      %v1271 = vld [vmem:[#allocation9 + $0xd50] sm:$0xff]
      %v1272 = vld [vmem:[#allocation9 + $0xd58] sm:$0xff]
      %v1273 = vld [vmem:[#allocation9 + $0xd60] sm:$0xff]
      %v1274 = vld [vmem:[#allocation9 + $0xd68] sm:$0xff]
      %v1275 = vld [vmem:[#allocation9 + $0xd70] sm:$0xff]
      %v1276 = vld [vmem:[#allocation9 + $0xd78] sm:$0xff]
      %v1277 = vld [vmem:[#allocation9 + $0xd80] sm:$0xff]
      %v1278 = vld [vmem:[#allocation9 + $0xd88] sm:$0xff]
      %v1279 = vld [vmem:[#allocation9 + $0xd90] sm:$0xff]
      %v1280 = vld [vmem:[#allocation9 + $0xd98] sm:$0xff]
      %v1281 = vld [vmem:[#allocation9 + $0xda0] sm:$0xff]
      %v1282 = vld [vmem:[#allocation9 + $0xda8] sm:$0xff]
      %v1283 = vld [vmem:[#allocation9 + $0xdb0] sm:$0xff]
      %v1284 = vld [vmem:[#allocation9 + $0xdb8] sm:$0xff]
      %v1285 = vld [vmem:[#allocation9 + $0xdc0] sm:$0xff]
      %v1286 = vld [vmem:[#allocation9 + $0xdc8] sm:$0xff]
      %v1287 = vld [vmem:[#allocation9 + $0xdd0] sm:$0xff]
      %v1288 = vld [vmem:[#allocation9 + $0xdd8] sm:$0xff]
      %v1289 = vld [vmem:[#allocation9 + $0xde0] sm:$0xff]
      %v1290 = vld [vmem:[#allocation9 + $0xde8] sm:$0xff]
      %v1291 = vld [vmem:[#allocation9 + $0xdf0] sm:$0xff]
      %v1292 = vld [vmem:[#allocation9 + $0xdf8] sm:$0xff]
      %v1293 = vld [vmem:[#allocation9 + $0xe00] sm:$0xff]
      %v1294 = vld [vmem:[#allocation9 + $0xe08] sm:$0xff]
      %v1295 = vld [vmem:[#allocation9 + $0xe10] sm:$0xff]
      %v1296 = vld [vmem:[#allocation9 + $0xe18] sm:$0xff]
      %v1297 = vld [vmem:[#allocation9 + $0xe20] sm:$0xff]
      %v1298 = vld [vmem:[#allocation9 + $0xe28] sm:$0xff]
      %v1299 = vld [vmem:[#allocation9 + $0xe30] sm:$0xff]
      %v1300 = vld [vmem:[#allocation9 + $0xe38] sm:$0xff]
      %v1301 = vld [vmem:[#allocation9 + $0xe40] sm:$0xff]
      %v1302 = vld [vmem:[#allocation9 + $0xe48] sm:$0xff]
      %v1303 = vld [vmem:[#allocation9 + $0xe50] sm:$0xff]
      %v1304 = vld [vmem:[#allocation9 + $0xe58] sm:$0xff]
      %v1305 = vld [vmem:[#allocation9 + $0xe60] sm:$0xff]
      %v1306 = vld [vmem:[#allocation9 + $0xe68] sm:$0xff]
      %v1307 = vld [vmem:[#allocation9 + $0xe70] sm:$0xff]
      %v1308 = vld [vmem:[#allocation9 + $0xe78] sm:$0xff]
      %v1309 = vld [vmem:[#allocation9 + $0xe80] sm:$0xff]
      %v1310 = vld [vmem:[#allocation9 + $0xe88] sm:$0xff]
      %v1311 = vld [vmem:[#allocation9 + $0xe90] sm:$0xff]
      %v1312 = vld [vmem:[#allocation9 + $0xe98] sm:$0xff]
      %v1313 = vld [vmem:[#allocation9 + $0xea0] sm:$0xff]
      %v1314 = vld [vmem:[#allocation9 + $0xea8] sm:$0xff]
      %v1315 = vld [vmem:[#allocation9 + $0xeb0] sm:$0xff]
      %v1316 = vld [vmem:[#allocation9 + $0xeb8] sm:$0xff]
      %v1317 = vld [vmem:[#allocation9 + $0xec0] sm:$0xff]
      %v1318 = vld [vmem:[#allocation9 + $0xec8] sm:$0xff]
      %v1319 = vld [vmem:[#allocation9 + $0xed0] sm:$0xff]
      %v1320 = vld [vmem:[#allocation9 + $0xed8] sm:$0xff]
      %v1321 = vld [vmem:[#allocation9 + $0xee0] sm:$0xff]
      %v1322 = vld [vmem:[#allocation9 + $0xee8] sm:$0xff]
      %v1323 = vld [vmem:[#allocation9 + $0xef0] sm:$0xff]
      %v1324 = vld [vmem:[#allocation9 + $0xef8] sm:$0xff]
      %v1325 = vld [vmem:[#allocation9 + $0xf00] sm:$0xff]
      %v1326 = vld [vmem:[#allocation9 + $0xf08] sm:$0xff]
      %v1327 = vld [vmem:[#allocation9 + $0xf10] sm:$0xff]
      %v1328 = vld [vmem:[#allocation9 + $0xf18] sm:$0xff]
      %v1329 = vld [vmem:[#allocation9 + $0xf20] sm:$0xff]
      %v1330 = vld [vmem:[#allocation9 + $0xf28] sm:$0xff]
      %v1331 = vld [vmem:[#allocation9 + $0xf30] sm:$0xff]
      %v1332 = vld [vmem:[#allocation9 + $0xf38] sm:$0xff]
      %v1333 = vld [vmem:[#allocation9 + $0xf40] sm:$0xff]
      %v1334 = vld [vmem:[#allocation9 + $0xf48] sm:$0xff]
      %v1335 = vld [vmem:[#allocation9 + $0xf50] sm:$0xff]
      %v1336 = vld [vmem:[#allocation9 + $0xf58] sm:$0xff]
      %v1337 = vld [vmem:[#allocation9 + $0xf60] sm:$0xff]
      %v1338 = vld [vmem:[#allocation9 + $0xf68] sm:$0xff]
      %v1339 = vld [vmem:[#allocation9 + $0xf70] sm:$0xff]
      %v1340 = vld [vmem:[#allocation9 + $0xf78] sm:$0xff]
      %v1341 = vld [vmem:[#allocation9 + $0xf80] sm:$0xff]
      %v1342 = vld [vmem:[#allocation9 + $0xf88] sm:$0xff]
      %v1343 = vld [vmem:[#allocation9 + $0xf90] sm:$0xff]
      %v1344 = vld [vmem:[#allocation9 + $0xf98] sm:$0xff]
      %v1345 = vld [vmem:[#allocation9 + $0xfa0] sm:$0xff]
      %v1346 = vld [vmem:[#allocation9 + $0xfa8] sm:$0xff]
      %v1347 = vld [vmem:[#allocation9 + $0xfb0] sm:$0xff]
      %v1348 = vld [vmem:[#allocation9 + $0xfb8] sm:$0xff]
      %v1349 = vld [vmem:[#allocation9 + $0xfc0] sm:$0xff]
      %v1350 = vld [vmem:[#allocation9 + $0xfc8] sm:$0xff]
      %v1351 = vld [vmem:[#allocation9 + $0xfd0] sm:$0xff]
      %v1352 = vld [vmem:[#allocation9 + $0xfd8] sm:$0xff]
      %v1353 = vld [vmem:[#allocation9 + $0xfe0] sm:$0xff]
      %v1354 = vld [vmem:[#allocation9 + $0xfe8] sm:$0xff]
      %v1355 = vld [vmem:[#allocation9 + $0xff0] sm:$0xff]
      %v1356 = vld [vmem:[#allocation9 + $0xff8] sm:$0xff]
      %v1357 = vld [vmem:[#allocation11] sm:$0xf]
      %v1359 = vlaneseq
      %v1360 = vshrl.u32 %v1359, 7
      %v1361 = vsub.s32 0, %v1360
      %v1362 = vrot.slane %v1357, %v1361
      %v1363 = vlaneseq
      %v1364 = vshrl.u32 %v1363, 7
      %v1365 = vsub.s32 1, %v1364
      %v1366 = vrot.slane %v1357, %v1365
      %v1367 = vlaneseq
      %v1368 = vshrl.u32 %v1367, 7
      %v1369 = vsub.s32 2, %v1368
      %v1370 = vrot.slane %v1357, %v1369
      %v1371 = vlaneseq
      %v1372 = vshrl.u32 %v1371, 7
      %v1373 = vsub.s32 3, %v1372
      %v1374 = vrot.slane %v1357, %v1373
      %1379 = vmatprep.subr.mxu0 %v846
      %1380 = vmatpush1.msra.mxu0 %v845
      %1381 = vmatprep.subr.mxu0 %v850
      %1382 = vmatpush1.msra.mxu0 %v849
      %1383 = vmatprep.subr.mxu0 %v854
      %1384 = vmatpush1.msra.mxu0 %v853
      %1385 = vmatprep.subr.mxu0 %v858
      %1386 = vmatpush1.msra.mxu0 %v857
      %1387 = vmatprep.subr.mxu0 %v862
      %1388 = vmatpush1.msra.mxu0 %v861
      %1389 = vmatprep.subr.mxu0 %v866
      %1390 = vmatpush1.msra.mxu0 %v865
      %1391 = vmatprep.subr.mxu0 %v870
      %1392 = vmatpush1.msra.mxu0 %v869
      %1393 = vmatprep.subr.mxu0 %v874
      %1394 = vmatpush1.msra.mxu0 %v873
      %1395 = vmatprep.subr.mxu0 %v878
      %1396 = vmatpush1.msra.mxu0 %v877
      %1397 = vmatprep.subr.mxu0 %v882
      %1398 = vmatpush1.msra.mxu0 %v881
      %1399 = vmatprep.subr.mxu0 %v886
      %1400 = vmatpush1.msra.mxu0 %v885
      %1401 = vmatprep.subr.mxu0 %v890
      %1402 = vmatpush1.msra.mxu0 %v889
      %1403 = vmatprep.subr.mxu0 %v894
      %1404 = vmatpush1.msra.mxu0 %v893
      %1405 = vmatprep.subr.mxu0 %v898
      %1406 = vmatpush1.msra.mxu0 %v897
      %1407 = vmatprep.subr.mxu0 %v902
      %1408 = vmatpush1.msra.mxu0 %v901
      %1409 = vmatprep.subr.mxu0 %v906
      %1410 = vmatpush1.msra.mxu0 %v905
      %1411 = vmatprep.subr.mxu0 %v910
      %1412 = vmatpush1.msra.mxu0 %v909
      %1413 = vmatprep.subr.mxu0 %v914
      %1414 = vmatpush1.msra.mxu0 %v913
      %1415 = vmatprep.subr.mxu0 %v918
      %1416 = vmatpush1.msra.mxu0 %v917
      %1417 = vmatprep.subr.mxu0 %v922
      %1418 = vmatpush1.msra.mxu0 %v921
      %1419 = vmatprep.subr.mxu0 %v926
      %1420 = vmatpush1.msra.mxu0 %v925
      %1421 = vmatprep.subr.mxu0 %v930
      %1422 = vmatpush1.msra.mxu0 %v929
      %1423 = vmatprep.subr.mxu0 %v934
      %1424 = vmatpush1.msra.mxu0 %v933
      %1425 = vmatprep.subr.mxu0 %v938
      %1426 = vmatpush1.msra.mxu0 %v937
      %1427 = vmatprep.subr.mxu0 %v942
      %1428 = vmatpush1.msra.mxu0 %v941
      %1429 = vmatprep.subr.mxu0 %v946
      %1430 = vmatpush1.msra.mxu0 %v945
      %1431 = vmatprep.subr.mxu0 %v950
      %1432 = vmatpush1.msra.mxu0 %v949
      %1433 = vmatprep.subr.mxu0 %v954
      %1434 = vmatpush1.msra.mxu0 %v953
      %1435 = vmatprep.subr.mxu0 %v958
      %1436 = vmatpush1.msra.mxu0 %v957
      %1437 = vmatprep.subr.mxu0 %v962
      %1438 = vmatpush1.msra.mxu0 %v961
      %1439 = vmatprep.subr.mxu0 %v966
      %1440 = vmatpush1.msra.mxu0 %v965
      %1441 = vmatprep.subr.mxu0 %v970
      %1442 = vmatpush1.msra.mxu0 %v969
      %1443 = vmatprep.mubr.f32.mxu0 %v830
      %1444 = vmatmul.mubr.f32.gmra.mrb[0].mxu0 %v829
      %v1445 = vpop.f32.mrb[0].mxu0
      %v1446 = vadd.f32 %v1362, %v1445
      %v1447 = vpop.f32.mrb[0].mxu0
      %v1448 = vadd.f32 %v1366, %v1447
      %1449 = vmatprep.mubr.f32.mxu0 %v838
      %1450 = vmatmul.mubr.f32.gmra.mrb[0].mxu0 %v837
      %v1451 = vpop.f32.mrb[0].mxu0
      %v1452 = vadd.f32 %v1362, %v1451
      %v1453 = vpop.f32.mrb[0].mxu0
      %v1454 = vadd.f32 %v1366, %v1453
      %1455 = vdwg.mxu0
      %1456 = vmatprep.subr.mxu0 %v974
      %1457 = vmatpush1.msra.mxu0 %v973
      %1458 = vmatprep.subr.mxu0 %v978
      %1459 = vmatpush1.msra.mxu0 %v977
      %1460 = vmatprep.subr.mxu0 %v982
      %1461 = vmatpush1.msra.mxu0 %v981
      %1462 = vmatprep.subr.mxu0 %v986
      %1463 = vmatpush1.msra.mxu0 %v985
      %1464 = vmatprep.subr.mxu0 %v990
      %1465 = vmatpush1.msra.mxu0 %v989
      %1466 = vmatprep.subr.mxu0 %v994
      %1467 = vmatpush1.msra.mxu0 %v993
      %1468 = vmatprep.subr.mxu0 %v998
      %1469 = vmatpush1.msra.mxu0 %v997
      %1470 = vmatprep.subr.mxu0 %v1002
      %1471 = vmatpush1.msra.mxu0 %v1001
      %1472 = vmatprep.subr.mxu0 %v1006
      %1473 = vmatpush1.msra.mxu0 %v1005
      %1474 = vmatprep.subr.mxu0 %v1010
      %1475 = vmatpush1.msra.mxu0 %v1009
      %1476 = vmatprep.subr.mxu0 %v1014
      %1477 = vmatpush1.msra.mxu0 %v1013
      %1478 = vmatprep.subr.mxu0 %v1018
      %1479 = vmatpush1.msra.mxu0 %v1017
      %1480 = vmatprep.subr.mxu0 %v1022
      %1481 = vmatpush1.msra.mxu0 %v1021
      %1482 = vmatprep.subr.mxu0 %v1026
      %1483 = vmatpush1.msra.mxu0 %v1025
      %1484 = vmatprep.subr.mxu0 %v1030
      %1485 = vmatpush1.msra.mxu0 %v1029
      %1486 = vmatprep.subr.mxu0 %v1034
      %1487 = vmatpush1.msra.mxu0 %v1033
      %1488 = vmatprep.subr.mxu0 %v1038
      %1489 = vmatpush1.msra.mxu0 %v1037
      %1490 = vmatprep.subr.mxu0 %v1042
      %1491 = vmatpush1.msra.mxu0 %v1041
      %1492 = vmatprep.subr.mxu0 %v1046
      %1493 = vmatpush1.msra.mxu0 %v1045
      %1494 = vmatprep.subr.mxu0 %v1050
      %1495 = vmatpush1.msra.mxu0 %v1049
      %1496 = vmatprep.subr.mxu0 %v1054
      %1497 = vmatpush1.msra.mxu0 %v1053
      %1498 = vmatprep.subr.mxu0 %v1058
      %1499 = vmatpush1.msra.mxu0 %v1057
      %1500 = vmatprep.subr.mxu0 %v1062
      %1501 = vmatpush1.msra.mxu0 %v1061
      %1502 = vmatprep.subr.mxu0 %v1066
      %1503 = vmatpush1.msra.mxu0 %v1065
      %1504 = vmatprep.subr.mxu0 %v1070
      %1505 = vmatpush1.msra.mxu0 %v1069
      %1506 = vmatprep.subr.mxu0 %v1074
      %1507 = vmatpush1.msra.mxu0 %v1073
      %1508 = vmatprep.subr.mxu0 %v1078
      %1509 = vmatpush1.msra.mxu0 %v1077
      %1510 = vmatprep.subr.mxu0 %v1082
      %1511 = vmatpush1.msra.mxu0 %v1081
      %1512 = vmatprep.subr.mxu0 %v1086
      %1513 = vmatpush1.msra.mxu0 %v1085
      %1514 = vmatprep.subr.mxu0 %v1090
      %1515 = vmatpush1.msra.mxu0 %v1089
      %1516 = vmatprep.subr.mxu0 %v1094
      %1517 = vmatpush1.msra.mxu0 %v1093
      %1518 = vmatprep.subr.mxu0 %v1098
      %1519 = vmatpush1.msra.mxu0 %v1097
      %1520 = vmatprep.mubr.f32.mxu0 %v832
      %1521 = vmatmul.mubr.f32.gmra.mrb[0].mxu0 %v831
      %v1522 = vpop.f32.mrb[0].mxu0
      %v1523 = vadd.f32 %v1446, %v1522
      %v1524 = vpop.f32.mrb[0].mxu0
      %v1525 = vadd.f32 %v1448, %v1524
      %1526 = vmatprep.mubr.f32.mxu0 %v840
      %1527 = vmatmul.mubr.f32.gmra.mrb[0].mxu0 %v839
      %v1528 = vpop.f32.mrb[0].mxu0
      %v1529 = vadd.f32 %v1452, %v1528
      %v1530 = vpop.f32.mrb[0].mxu0
      %v1531 = vadd.f32 %v1454, %v1530
      %1532 = vdwg.mxu0
      %1533 = vmatprep.subr.mxu0 %v1102
      %1534 = vmatpush1.msra.mxu0 %v1101
      %1535 = vmatprep.subr.mxu0 %v1106
      %1536 = vmatpush1.msra.mxu0 %v1105
      %1537 = vmatprep.subr.mxu0 %v1110
      %1538 = vmatpush1.msra.mxu0 %v1109
      %1539 = vmatprep.subr.mxu0 %v1114
      %1540 = vmatpush1.msra.mxu0 %v1113
      %1541 = vmatprep.subr.mxu0 %v1118
      %1542 = vmatpush1.msra.mxu0 %v1117
      %1543 = vmatprep.subr.mxu0 %v1122
      %1544 = vmatpush1.msra.mxu0 %v1121
      %1545 = vmatprep.subr.mxu0 %v1126
      %1546 = vmatpush1.msra.mxu0 %v1125
      %1547 = vmatprep.subr.mxu0 %v1130
      %1548 = vmatpush1.msra.mxu0 %v1129
      %1549 = vmatprep.subr.mxu0 %v1134
      %1550 = vmatpush1.msra.mxu0 %v1133
      %1551 = vmatprep.subr.mxu0 %v1138
      %1552 = vmatpush1.msra.mxu0 %v1137
      %1553 = vmatprep.subr.mxu0 %v1142
      %1554 = vmatpush1.msra.mxu0 %v1141
      %1555 = vmatprep.subr.mxu0 %v1146
      %1556 = vmatpush1.msra.mxu0 %v1145
      %1557 = vmatprep.subr.mxu0 %v1150
      %1558 = vmatpush1.msra.mxu0 %v1149
      %1559 = vmatprep.subr.mxu0 %v1154
      %1560 = vmatpush1.msra.mxu0 %v1153
      %1561 = vmatprep.subr.mxu0 %v1158
      %1562 = vmatpush1.msra.mxu0 %v1157
      %1563 = vmatprep.subr.mxu0 %v1162
      %1564 = vmatpush1.msra.mxu0 %v1161
      %1565 = vmatprep.subr.mxu0 %v1166
      %1566 = vmatpush1.msra.mxu0 %v1165
      %1567 = vmatprep.subr.mxu0 %v1170
      %1568 = vmatpush1.msra.mxu0 %v1169
      %1569 = vmatprep.subr.mxu0 %v1174
      %1570 = vmatpush1.msra.mxu0 %v1173
      %1571 = vmatprep.subr.mxu0 %v1178
      %1572 = vmatpush1.msra.mxu0 %v1177
      %1573 = vmatprep.subr.mxu0 %v1182
      %1574 = vmatpush1.msra.mxu0 %v1181
      %1575 = vmatprep.subr.mxu0 %v1186
      %1576 = vmatpush1.msra.mxu0 %v1185
      %1577 = vmatprep.subr.mxu0 %v1190
      %1578 = vmatpush1.msra.mxu0 %v1189
      %1579 = vmatprep.subr.mxu0 %v1194
      %1580 = vmatpush1.msra.mxu0 %v1193
      %1581 = vmatprep.subr.mxu0 %v1198
      %1582 = vmatpush1.msra.mxu0 %v1197
      %1583 = vmatprep.subr.mxu0 %v1202
      %1584 = vmatpush1.msra.mxu0 %v1201
      %1585 = vmatprep.subr.mxu0 %v1206
      %1586 = vmatpush1.msra.mxu0 %v1205
      %1587 = vmatprep.subr.mxu0 %v1210
      %1588 = vmatpush1.msra.mxu0 %v1209
      %1589 = vmatprep.subr.mxu0 %v1214
      %1590 = vmatpush1.msra.mxu0 %v1213
      %1591 = vmatprep.subr.mxu0 %v1218
      %1592 = vmatpush1.msra.mxu0 %v1217
      %1593 = vmatprep.subr.mxu0 %v1222
      %1594 = vmatpush1.msra.mxu0 %v1221
      %1595 = vmatprep.subr.mxu0 %v1226
      %1596 = vmatpush1.msra.mxu0 %v1225
      %1597 = vmatprep.mubr.f32.mxu0 %v834
      %1598 = vmatmul.mubr.f32.gmra.mrb[0].mxu0 %v833
      %v1599 = vpop.f32.mrb[0].mxu0
      %v1600 = vadd.f32 %v1523, %v1599
      %v1601 = vpop.f32.mrb[0].mxu0
      %v1602 = vadd.f32 %v1525, %v1601
      %1603 = vmatprep.mubr.f32.mxu0 %v842
      %1604 = vmatmul.mubr.f32.gmra.mrb[0].mxu0 %v841
      %v1605 = vpop.f32.mrb[0].mxu0
      %v1606 = vadd.f32 %v1529, %v1605
      %v1607 = vpop.f32.mrb[0].mxu0
      %v1608 = vadd.f32 %v1531, %v1607
      %1609 = vdwg.mxu0
      %1610 = vmatprep.subr.mxu0 %v1230
      %1611 = vmatpush1.msra.mxu0 %v1229
      %1612 = vmatprep.subr.mxu0 %v1234
      %1613 = vmatpush1.msra.mxu0 %v1233
      %1614 = vmatprep.subr.mxu0 %v1238
      %1615 = vmatpush1.msra.mxu0 %v1237
      %1616 = vmatprep.subr.mxu0 %v1242
      %1617 = vmatpush1.msra.mxu0 %v1241
      %1618 = vmatprep.subr.mxu0 %v1246
      %1619 = vmatpush1.msra.mxu0 %v1245
      %1620 = vmatprep.subr.mxu0 %v1250
      %1621 = vmatpush1.msra.mxu0 %v1249
      %1622 = vmatprep.subr.mxu0 %v1254
      %1623 = vmatpush1.msra.mxu0 %v1253
      %1624 = vmatprep.subr.mxu0 %v1258
      %1625 = vmatpush1.msra.mxu0 %v1257
      %1626 = vmatprep.subr.mxu0 %v1262
      %1627 = vmatpush1.msra.mxu0 %v1261
      %1628 = vmatprep.subr.mxu0 %v1266
      %1629 = vmatpush1.msra.mxu0 %v1265
      %1630 = vmatprep.subr.mxu0 %v1270
      %1631 = vmatpush1.msra.mxu0 %v1269
      %1632 = vmatprep.subr.mxu0 %v1274
      %1633 = vmatpush1.msra.mxu0 %v1273
      %1634 = vmatprep.subr.mxu0 %v1278
      %1635 = vmatpush1.msra.mxu0 %v1277
      %1636 = vmatprep.subr.mxu0 %v1282
      %1637 = vmatpush1.msra.mxu0 %v1281
      %1638 = vmatprep.subr.mxu0 %v1286
      %1639 = vmatpush1.msra.mxu0 %v1285
      %1640 = vmatprep.subr.mxu0 %v1290
      %1641 = vmatpush1.msra.mxu0 %v1289
      %1642 = vmatprep.subr.mxu0 %v1294
      %1643 = vmatpush1.msra.mxu0 %v1293
      %1644 = vmatprep.subr.mxu0 %v1298
      %1645 = vmatpush1.msra.mxu0 %v1297
      %1646 = vmatprep.subr.mxu0 %v1302
      %1647 = vmatpush1.msra.mxu0 %v1301
      %1648 = vmatprep.subr.mxu0 %v1306
      %1649 = vmatpush1.msra.mxu0 %v1305
      %1650 = vmatprep.subr.mxu0 %v1310
      %1651 = vmatpush1.msra.mxu0 %v1309
      %1652 = vmatprep.subr.mxu0 %v1314
      %1653 = vmatpush1.msra.mxu0 %v1313
      %1654 = vmatprep.subr.mxu0 %v1318
      %1655 = vmatpush1.msra.mxu0 %v1317
      %1656 = vmatprep.subr.mxu0 %v1322
      %1657 = vmatpush1.msra.mxu0 %v1321
      %1658 = vmatprep.subr.mxu0 %v1326
      %1659 = vmatpush1.msra.mxu0 %v1325
      %1660 = vmatprep.subr.mxu0 %v1330
      %1661 = vmatpush1.msra.mxu0 %v1329
      %1662 = vmatprep.subr.mxu0 %v1334
      %1663 = vmatpush1.msra.mxu0 %v1333
      %1664 = vmatprep.subr.mxu0 %v1338
      %1665 = vmatpush1.msra.mxu0 %v1337
      %1666 = vmatprep.subr.mxu0 %v1342
      %1667 = vmatpush1.msra.mxu0 %v1341
      %1668 = vmatprep.subr.mxu0 %v1346
      %1669 = vmatpush1.msra.mxu0 %v1345
      %1670 = vmatprep.subr.mxu0 %v1350
      %1671 = vmatpush1.msra.mxu0 %v1349
      %1672 = vmatprep.subr.mxu0 %v1354
      %1673 = vmatpush1.msra.mxu0 %v1353
      %1674 = vmatprep.mubr.f32.mxu0 %v836
      %1675 = vmatmul.mubr.f32.gmra.mrb[0].mxu0 %v835
      %v1676 = vpop.f32.mrb[0].mxu0
      %v1677 = vadd.f32 %v1600, %v1676
      %v1678 = vpop.f32.mrb[0].mxu0
      %v1679 = vadd.f32 %v1602, %v1678
      %1680 = vmatprep.mubr.f32.mxu0 %v844
      %1681 = vmatmul.mubr.f32.gmra.mrb[0].mxu0 %v843
      %v1682 = vpop.f32.mrb[0].mxu0
      %v1683 = vadd.f32 %v1606, %v1682
      %v1684 = vpop.f32.mrb[0].mxu0
      %v1685 = vadd.f32 %v1608, %v1684
      %1686 = vdwg.mxu0
      %1687 = vmatprep.subr.mxu0 %v848
      %1688 = vmatpush1.msra.mxu0 %v847
      %1689 = vmatprep.subr.mxu0 %v852
      %1690 = vmatpush1.msra.mxu0 %v851
      %1691 = vmatprep.subr.mxu0 %v856
      %1692 = vmatpush1.msra.mxu0 %v855
      %1693 = vmatprep.subr.mxu0 %v860
      %1694 = vmatpush1.msra.mxu0 %v859
      %1695 = vmatprep.subr.mxu0 %v864
      %1696 = vmatpush1.msra.mxu0 %v863
      %1697 = vmatprep.subr.mxu0 %v868
      %1698 = vmatpush1.msra.mxu0 %v867
      %1699 = vmatprep.subr.mxu0 %v872
      %1700 = vmatpush1.msra.mxu0 %v871
      %1701 = vmatprep.subr.mxu0 %v876
      %1702 = vmatpush1.msra.mxu0 %v875
      %1703 = vmatprep.subr.mxu0 %v880
      %1704 = vmatpush1.msra.mxu0 %v879
      %1705 = vmatprep.subr.mxu0 %v884
      %1706 = vmatpush1.msra.mxu0 %v883
      %1707 = vmatprep.subr.mxu0 %v888
      %1708 = vmatpush1.msra.mxu0 %v887
      %1709 = vmatprep.subr.mxu0 %v892
      %1710 = vmatpush1.msra.mxu0 %v891
      %1711 = vmatprep.subr.mxu0 %v896
      %1712 = vmatpush1.msra.mxu0 %v895
      %1713 = vmatprep.subr.mxu0 %v900
      %1714 = vmatpush1.msra.mxu0 %v899
      %1715 = vmatprep.subr.mxu0 %v904
      %1716 = vmatpush1.msra.mxu0 %v903
      %1717 = vmatprep.subr.mxu0 %v908
      %1718 = vmatpush1.msra.mxu0 %v907
      %1719 = vmatprep.subr.mxu0 %v912
      %1720 = vmatpush1.msra.mxu0 %v911
      %1721 = vmatprep.subr.mxu0 %v916
      %1722 = vmatpush1.msra.mxu0 %v915
      %1723 = vmatprep.subr.mxu0 %v920
      %1724 = vmatpush1.msra.mxu0 %v919
      %1725 = vmatprep.subr.mxu0 %v924
      %1726 = vmatpush1.msra.mxu0 %v923
      %1727 = vmatprep.subr.mxu0 %v928
      %1728 = vmatpush1.msra.mxu0 %v927
      %1729 = vmatprep.subr.mxu0 %v932
      %1730 = vmatpush1.msra.mxu0 %v931
      %1731 = vmatprep.subr.mxu0 %v936
      %1732 = vmatpush1.msra.mxu0 %v935
      %1733 = vmatprep.subr.mxu0 %v940
      %1734 = vmatpush1.msra.mxu0 %v939
      %1735 = vmatprep.subr.mxu0 %v944
      %1736 = vmatpush1.msra.mxu0 %v943
      %1737 = vmatprep.subr.mxu0 %v948
      %1738 = vmatpush1.msra.mxu0 %v947
      %1739 = vmatprep.subr.mxu0 %v952
      %1740 = vmatpush1.msra.mxu0 %v951
      %1741 = vmatprep.subr.mxu0 %v956
      %1742 = vmatpush1.msra.mxu0 %v955
      %1743 = vmatprep.subr.mxu0 %v960
      %1744 = vmatpush1.msra.mxu0 %v959
      %1745 = vmatprep.subr.mxu0 %v964
      %1746 = vmatpush1.msra.mxu0 %v963
      %1747 = vmatprep.subr.mxu0 %v968
      %1748 = vmatpush1.msra.mxu0 %v967
      %1749 = vmatprep.subr.mxu0 %v972
      %1750 = vmatpush1.msra.mxu0 %v971
      %1751 = vmatprep.mubr.f32.mxu0 %v830
      %1752 = vmatmul.mubr.f32.gmra.mrb[0].mxu0 %v829
      %v1753 = vpop.f32.mrb[0].mxu0
      %v1754 = vadd.f32 %v1370, %v1753
      %v1755 = vpop.f32.mrb[0].mxu0
      %v1756 = vadd.f32 %v1374, %v1755
      %1757 = vmatprep.mubr.f32.mxu0 %v838
      %1758 = vmatmul.mubr.f32.gmra.mrb[0].mxu0 %v837
      %v1759 = vpop.f32.mrb[0].mxu0
      %v1760 = vadd.f32 %v1370, %v1759
      %v1761 = vpop.f32.mrb[0].mxu0
      %v1762 = vadd.f32 %v1374, %v1761
      %1763 = vdwg.mxu0
      %1764 = vmatprep.subr.mxu0 %v976
      %1765 = vmatpush1.msra.mxu0 %v975
      %1766 = vmatprep.subr.mxu0 %v980
      %1767 = vmatpush1.msra.mxu0 %v979
      %1768 = vmatprep.subr.mxu0 %v984
      %1769 = vmatpush1.msra.mxu0 %v983
      %1770 = vmatprep.subr.mxu0 %v988
      %1771 = vmatpush1.msra.mxu0 %v987
      %1772 = vmatprep.subr.mxu0 %v992
      %1773 = vmatpush1.msra.mxu0 %v991
      %1774 = vmatprep.subr.mxu0 %v996
      %1775 = vmatpush1.msra.mxu0 %v995
      %1776 = vmatprep.subr.mxu0 %v1000
      %1777 = vmatpush1.msra.mxu0 %v999
      %1778 = vmatprep.subr.mxu0 %v1004
      %1779 = vmatpush1.msra.mxu0 %v1003
      %1780 = vmatprep.subr.mxu0 %v1008
      %1781 = vmatpush1.msra.mxu0 %v1007
      %1782 = vmatprep.subr.mxu0 %v1012
      %1783 = vmatpush1.msra.mxu0 %v1011
      %1784 = vmatprep.subr.mxu0 %v1016
      %1785 = vmatpush1.msra.mxu0 %v1015
      %1786 = vmatprep.subr.mxu0 %v1020
      %1787 = vmatpush1.msra.mxu0 %v1019
      %1788 = vmatprep.subr.mxu0 %v1024
      %1789 = vmatpush1.msra.mxu0 %v1023
      %1790 = vmatprep.subr.mxu0 %v1028
      %1791 = vmatpush1.msra.mxu0 %v1027
      %1792 = vmatprep.subr.mxu0 %v1032
      %1793 = vmatpush1.msra.mxu0 %v1031
      %1794 = vmatprep.subr.mxu0 %v1036
      %1795 = vmatpush1.msra.mxu0 %v1035
      %1796 = vmatprep.subr.mxu0 %v1040
      %1797 = vmatpush1.msra.mxu0 %v1039
      %1798 = vmatprep.subr.mxu0 %v1044
      %1799 = vmatpush1.msra.mxu0 %v1043
      %1800 = vmatprep.subr.mxu0 %v1048
      %1801 = vmatpush1.msra.mxu0 %v1047
      %1802 = vmatprep.subr.mxu0 %v1052
      %1803 = vmatpush1.msra.mxu0 %v1051
      %1804 = vmatprep.subr.mxu0 %v1056
      %1805 = vmatpush1.msra.mxu0 %v1055
      %1806 = vmatprep.subr.mxu0 %v1060
      %1807 = vmatpush1.msra.mxu0 %v1059
      %1808 = vmatprep.subr.mxu0 %v1064
      %1809 = vmatpush1.msra.mxu0 %v1063
      %1810 = vmatprep.subr.mxu0 %v1068
      %1811 = vmatpush1.msra.mxu0 %v1067
      %1812 = vmatprep.subr.mxu0 %v1072
      %1813 = vmatpush1.msra.mxu0 %v1071
      %1814 = vmatprep.subr.mxu0 %v1076
      %1815 = vmatpush1.msra.mxu0 %v1075
      %1816 = vmatprep.subr.mxu0 %v1080
      %1817 = vmatpush1.msra.mxu0 %v1079
      %1818 = vmatprep.subr.mxu0 %v1084
      %1819 = vmatpush1.msra.mxu0 %v1083
      %1820 = vmatprep.subr.mxu0 %v1088
      %1821 = vmatpush1.msra.mxu0 %v1087
      %1822 = vmatprep.subr.mxu0 %v1092
      %1823 = vmatpush1.msra.mxu0 %v1091
      %1824 = vmatprep.subr.mxu0 %v1096
      %1825 = vmatpush1.msra.mxu0 %v1095
      %1826 = vmatprep.subr.mxu0 %v1100
      %1827 = vmatpush1.msra.mxu0 %v1099
      %1828 = vmatprep.mubr.f32.mxu0 %v832
      %1829 = vmatmul.mubr.f32.gmra.mrb[0].mxu0 %v831
      %v1830 = vpop.f32.mrb[0].mxu0
      %v1831 = vadd.f32 %v1754, %v1830
      %v1832 = vpop.f32.mrb[0].mxu0
      %v1833 = vadd.f32 %v1756, %v1832
      %1834 = vmatprep.mubr.f32.mxu0 %v840
      %1835 = vmatmul.mubr.f32.gmra.mrb[0].mxu0 %v839
      %v1836 = vpop.f32.mrb[0].mxu0
      %v1837 = vadd.f32 %v1760, %v1836
      %v1838 = vpop.f32.mrb[0].mxu0
      %v1839 = vadd.f32 %v1762, %v1838
      %1840 = vdwg.mxu0
      %1841 = vmatprep.subr.mxu0 %v1104
      %1842 = vmatpush1.msra.mxu0 %v1103
      %1843 = vmatprep.subr.mxu0 %v1108
      %1844 = vmatpush1.msra.mxu0 %v1107
      %1845 = vmatprep.subr.mxu0 %v1112
      %1846 = vmatpush1.msra.mxu0 %v1111
      %1847 = vmatprep.subr.mxu0 %v1116
      %1848 = vmatpush1.msra.mxu0 %v1115
      %1849 = vmatprep.subr.mxu0 %v1120
      %1850 = vmatpush1.msra.mxu0 %v1119
      %1851 = vmatprep.subr.mxu0 %v1124
      %1852 = vmatpush1.msra.mxu0 %v1123
      %1853 = vmatprep.subr.mxu0 %v1128
      %1854 = vmatpush1.msra.mxu0 %v1127
      %1855 = vmatprep.subr.mxu0 %v1132
      %1856 = vmatpush1.msra.mxu0 %v1131
      %1857 = vmatprep.subr.mxu0 %v1136
      %1858 = vmatpush1.msra.mxu0 %v1135
      %1859 = vmatprep.subr.mxu0 %v1140
      %1860 = vmatpush1.msra.mxu0 %v1139
      %1861 = vmatprep.subr.mxu0 %v1144
      %1862 = vmatpush1.msra.mxu0 %v1143
      %1863 = vmatprep.subr.mxu0 %v1148
      %1864 = vmatpush1.msra.mxu0 %v1147
      %1865 = vmatprep.subr.mxu0 %v1152
      %1866 = vmatpush1.msra.mxu0 %v1151
      %1867 = vmatprep.subr.mxu0 %v1156
      %1868 = vmatpush1.msra.mxu0 %v1155
      %1869 = vmatprep.subr.mxu0 %v1160
      %1870 = vmatpush1.msra.mxu0 %v1159
      %1871 = vmatprep.subr.mxu0 %v1164
      %1872 = vmatpush1.msra.mxu0 %v1163
      %1873 = vmatprep.subr.mxu0 %v1168
      %1874 = vmatpush1.msra.mxu0 %v1167
      %1875 = vmatprep.subr.mxu0 %v1172
      %1876 = vmatpush1.msra.mxu0 %v1171
      %1877 = vmatprep.subr.mxu0 %v1176
      %1878 = vmatpush1.msra.mxu0 %v1175
      %1879 = vmatprep.subr.mxu0 %v1180
      %1880 = vmatpush1.msra.mxu0 %v1179
      %1881 = vmatprep.subr.mxu0 %v1184
      %1882 = vmatpush1.msra.mxu0 %v1183
      %1883 = vmatprep.subr.mxu0 %v1188
      %1884 = vmatpush1.msra.mxu0 %v1187
      %1885 = vmatprep.subr.mxu0 %v1192
      %1886 = vmatpush1.msra.mxu0 %v1191
      %1887 = vmatprep.subr.mxu0 %v1196
      %1888 = vmatpush1.msra.mxu0 %v1195
      %1889 = vmatprep.subr.mxu0 %v1200
      %1890 = vmatpush1.msra.mxu0 %v1199
      %1891 = vmatprep.subr.mxu0 %v1204
      %1892 = vmatpush1.msra.mxu0 %v1203
      %1893 = vmatprep.subr.mxu0 %v1208
      %1894 = vmatpush1.msra.mxu0 %v1207
      %1895 = vmatprep.subr.mxu0 %v1212
      %1896 = vmatpush1.msra.mxu0 %v1211
      %1897 = vmatprep.subr.mxu0 %v1216
      %1898 = vmatpush1.msra.mxu0 %v1215
      %1899 = vmatprep.subr.mxu0 %v1220
      %1900 = vmatpush1.msra.mxu0 %v1219
      %1901 = vmatprep.subr.mxu0 %v1224
      %1902 = vmatpush1.msra.mxu0 %v1223
      %1903 = vmatprep.subr.mxu0 %v1228
      %1904 = vmatpush1.msra.mxu0 %v1227
      %1905 = vmatprep.mubr.f32.mxu0 %v834
      %1906 = vmatmul.mubr.f32.gmra.mrb[0].mxu0 %v833
      %v1907 = vpop.f32.mrb[0].mxu0
      %v1908 = vadd.f32 %v1831, %v1907
      %v1909 = vpop.f32.mrb[0].mxu0
      %v1910 = vadd.f32 %v1833, %v1909
      %1911 = vmatprep.mubr.f32.mxu0 %v842
      %1912 = vmatmul.mubr.f32.gmra.mrb[0].mxu0 %v841
      %v1913 = vpop.f32.mrb[0].mxu0
      %v1914 = vadd.f32 %v1837, %v1913
      %v1915 = vpop.f32.mrb[0].mxu0
      %v1916 = vadd.f32 %v1839, %v1915
      %1917 = vdwg.mxu0
      %1918 = vmatprep.subr.mxu0 %v1232
      %1919 = vmatpush1.msra.mxu0 %v1231
      %1920 = vmatprep.subr.mxu0 %v1236
      %1921 = vmatpush1.msra.mxu0 %v1235
      %1922 = vmatprep.subr.mxu0 %v1240
      %1923 = vmatpush1.msra.mxu0 %v1239
      %1924 = vmatprep.subr.mxu0 %v1244
      %1925 = vmatpush1.msra.mxu0 %v1243
      %1926 = vmatprep.subr.mxu0 %v1248
      %1927 = vmatpush1.msra.mxu0 %v1247
      %1928 = vmatprep.subr.mxu0 %v1252
      %1929 = vmatpush1.msra.mxu0 %v1251
      %1930 = vmatprep.subr.mxu0 %v1256
      %1931 = vmatpush1.msra.mxu0 %v1255
      %1932 = vmatprep.subr.mxu0 %v1260
      %1933 = vmatpush1.msra.mxu0 %v1259
      %1934 = vmatprep.subr.mxu0 %v1264
      %1935 = vmatpush1.msra.mxu0 %v1263
      %1936 = vmatprep.subr.mxu0 %v1268
      %1937 = vmatpush1.msra.mxu0 %v1267
      %1938 = vmatprep.subr.mxu0 %v1272
      %1939 = vmatpush1.msra.mxu0 %v1271
      %1940 = vmatprep.subr.mxu0 %v1276
      %1941 = vmatpush1.msra.mxu0 %v1275
      %1942 = vmatprep.subr.mxu0 %v1280
      %1943 = vmatpush1.msra.mxu0 %v1279
      %1944 = vmatprep.subr.mxu0 %v1284
      %1945 = vmatpush1.msra.mxu0 %v1283
      %1946 = vmatprep.subr.mxu0 %v1288
      %1947 = vmatpush1.msra.mxu0 %v1287
      %1948 = vmatprep.subr.mxu0 %v1292
      %1949 = vmatpush1.msra.mxu0 %v1291
      %1950 = vmatprep.subr.mxu0 %v1296
      %1951 = vmatpush1.msra.mxu0 %v1295
      %1952 = vmatprep.subr.mxu0 %v1300
      %1953 = vmatpush1.msra.mxu0 %v1299
      %1954 = vmatprep.subr.mxu0 %v1304
      %1955 = vmatpush1.msra.mxu0 %v1303
      %1956 = vmatprep.subr.mxu0 %v1308
      %1957 = vmatpush1.msra.mxu0 %v1307
      %1958 = vmatprep.subr.mxu0 %v1312
      %1959 = vmatpush1.msra.mxu0 %v1311
      %1960 = vmatprep.subr.mxu0 %v1316
      %1961 = vmatpush1.msra.mxu0 %v1315
      %1962 = vmatprep.subr.mxu0 %v1320
      %1963 = vmatpush1.msra.mxu0 %v1319
      %1964 = vmatprep.subr.mxu0 %v1324
      %1965 = vmatpush1.msra.mxu0 %v1323
      %1966 = vmatprep.subr.mxu0 %v1328
      %1967 = vmatpush1.msra.mxu0 %v1327
      %1968 = vmatprep.subr.mxu0 %v1332
      %1969 = vmatpush1.msra.mxu0 %v1331
      %1970 = vmatprep.subr.mxu0 %v1336
      %1971 = vmatpush1.msra.mxu0 %v1335
      %1972 = vmatprep.subr.mxu0 %v1340
      %1973 = vmatpush1.msra.mxu0 %v1339
      %1974 = vmatprep.subr.mxu0 %v1344
      %1975 = vmatpush1.msra.mxu0 %v1343
      %1976 = vmatprep.subr.mxu0 %v1348
      %1977 = vmatpush1.msra.mxu0 %v1347
      %1978 = vmatprep.subr.mxu0 %v1352
      %1979 = vmatpush1.msra.mxu0 %v1351
      %1980 = vmatprep.subr.mxu0 %v1356
      %1981 = vmatpush1.msra.mxu0 %v1355
      %1982 = vmatprep.mubr.f32.mxu0 %v836
      %1983 = vmatmul.mubr.f32.gmra.mrb[0].mxu0 %v835
      %v1984 = vpop.f32.mrb[0].mxu0
      %v1985 = vadd.f32 %v1908, %v1984
      %v1986 = vpop.f32.mrb[0].mxu0
      %v1987 = vadd.f32 %v1910, %v1986
      %1988 = vmatprep.mubr.f32.mxu0 %v844
      %1989 = vmatmul.mubr.f32.gmra.mrb[0].mxu0 %v843
      %v1990 = vpop.f32.mrb[0].mxu0
      %v1991 = vadd.f32 %v1914, %v1990
      %v1992 = vpop.f32.mrb[0].mxu0
      %v1993 = vadd.f32 %v1916, %v1992
      %1994 = vdwg.mxu0
      %v1995 = vmax.f32 %v1677, 0.0
      %v1996 = vmax.f32 %v1679, 0.0
      %v1997 = vmax.f32 %v1985, 0.0
      %v1998 = vmax.f32 %v1987, 0.0
      %v1999 = vmax.f32 %v1683, 0.0
      %v2000 = vmax.f32 %v1685, 0.0
      %v2001 = vmax.f32 %v1991, 0.0
      %v2002 = vmax.f32 %v1993, 0.0
      %v2003 = vld [vmem:[#allocation12] sm:$0xff]
      %v2004 = vld [vmem:[#allocation12 + $0x8] sm:$0xff]
      %v2005 = vld [vmem:[#allocation12 + $0x10] sm:$0xff]
      %v2006 = vld [vmem:[#allocation12 + $0x18] sm:$0xff]
      %v2007 = vld [vmem:[#allocation12 + $0x20] sm:$0xff]
      %v2008 = vld [vmem:[#allocation12 + $0x28] sm:$0xff]
      %v2009 = vld [vmem:[#allocation12 + $0x30] sm:$0xff]
      %v2010 = vld [vmem:[#allocation12 + $0x38] sm:$0xff]
      %v2011 = vld [vmem:[#allocation12 + $0x40] sm:$0xff]
      %v2012 = vld [vmem:[#allocation12 + $0x48] sm:$0xff]
      %v2013 = vld [vmem:[#allocation12 + $0x50] sm:$0xff]
      %v2014 = vld [vmem:[#allocation12 + $0x58] sm:$0xff]
      %v2015 = vld [vmem:[#allocation12 + $0x60] sm:$0xff]
      %v2016 = vld [vmem:[#allocation12 + $0x68] sm:$0xff]
      %v2017 = vld [vmem:[#allocation12 + $0x70] sm:$0xff]
      %v2018 = vld [vmem:[#allocation12 + $0x78] sm:$0xff]
      %v2019 = vld [vmem:[#allocation12 + $0x80] sm:$0xff]
      %v2020 = vld [vmem:[#allocation12 + $0x88] sm:$0xff]
      %v2021 = vld [vmem:[#allocation12 + $0x90] sm:$0xff]
      %v2022 = vld [vmem:[#allocation12 + $0x98] sm:$0xff]
      %v2023 = vld [vmem:[#allocation12 + $0xa0] sm:$0xff]
      %v2024 = vld [vmem:[#allocation12 + $0xa8] sm:$0xff]
      %v2025 = vld [vmem:[#allocation12 + $0xb0] sm:$0xff]
      %v2026 = vld [vmem:[#allocation12 + $0xb8] sm:$0xff]
      %v2027 = vld [vmem:[#allocation12 + $0xc0] sm:$0xff]
      %v2028 = vld [vmem:[#allocation12 + $0xc8] sm:$0xff]
      %v2029 = vld [vmem:[#allocation12 + $0xd0] sm:$0xff]
      %v2030 = vld [vmem:[#allocation12 + $0xd8] sm:$0xff]
      %v2031 = vld [vmem:[#allocation12 + $0xe0] sm:$0xff]
      %v2032 = vld [vmem:[#allocation12 + $0xe8] sm:$0xff]
      %v2033 = vld [vmem:[#allocation12 + $0xf0] sm:$0xff]
      %v2034 = vld [vmem:[#allocation12 + $0xf8] sm:$0xff]
      %v2035 = vld [vmem:[#allocation12 + $0x100] sm:$0xff]
      %v2036 = vld [vmem:[#allocation12 + $0x108] sm:$0xff]
      %v2037 = vld [vmem:[#allocation12 + $0x110] sm:$0xff]
      %v2038 = vld [vmem:[#allocation12 + $0x118] sm:$0xff]
      %v2039 = vld [vmem:[#allocation12 + $0x120] sm:$0xff]
      %v2040 = vld [vmem:[#allocation12 + $0x128] sm:$0xff]
      %v2041 = vld [vmem:[#allocation12 + $0x130] sm:$0xff]
      %v2042 = vld [vmem:[#allocation12 + $0x138] sm:$0xff]
      %v2043 = vld [vmem:[#allocation12 + $0x140] sm:$0xff]
      %v2044 = vld [vmem:[#allocation12 + $0x148] sm:$0xff]
      %v2045 = vld [vmem:[#allocation12 + $0x150] sm:$0xff]
      %v2046 = vld [vmem:[#allocation12 + $0x158] sm:$0xff]
      %v2047 = vld [vmem:[#allocation12 + $0x160] sm:$0xff]
      %v2048 = vld [vmem:[#allocation12 + $0x168] sm:$0xff]
      %v2049 = vld [vmem:[#allocation12 + $0x170] sm:$0xff]
      %v2050 = vld [vmem:[#allocation12 + $0x178] sm:$0xff]
      %v2051 = vld [vmem:[#allocation12 + $0x180] sm:$0xff]
      %v2052 = vld [vmem:[#allocation12 + $0x188] sm:$0xff]
      %v2053 = vld [vmem:[#allocation12 + $0x190] sm:$0xff]
      %v2054 = vld [vmem:[#allocation12 + $0x198] sm:$0xff]
      %v2055 = vld [vmem:[#allocation12 + $0x1a0] sm:$0xff]
      %v2056 = vld [vmem:[#allocation12 + $0x1a8] sm:$0xff]
      %v2057 = vld [vmem:[#allocation12 + $0x1b0] sm:$0xff]
      %v2058 = vld [vmem:[#allocation12 + $0x1b8] sm:$0xff]
      %v2059 = vld [vmem:[#allocation12 + $0x1c0] sm:$0xff]
      %v2060 = vld [vmem:[#allocation12 + $0x1c8] sm:$0xff]
      %v2061 = vld [vmem:[#allocation12 + $0x1d0] sm:$0xff]
      %v2062 = vld [vmem:[#allocation12 + $0x1d8] sm:$0xff]
      %v2063 = vld [vmem:[#allocation12 + $0x1e0] sm:$0xff]
      %v2064 = vld [vmem:[#allocation12 + $0x1e8] sm:$0xff]
      %v2065 = vld [vmem:[#allocation12 + $0x1f0] sm:$0xff]
      %v2066 = vld [vmem:[#allocation12 + $0x1f8] sm:$0xff]
      %v2067 = vld [vmem:[#allocation14] sm:$0x1]
      %v2069 = vlaneseq
      %v2070 = vshrl.u32 %v2069, 7
      %v2071 = vsub.s32 0, %v2070
      %v2072 = vrot.slane %v2067, %v2071
      %2074 = vmatprep.subr.mxu0 0.0
      %2075 = vmatpush1.msra.mxu0 %v2003
      %2076 = vmatprep.subr.mxu0 0.0
      %2077 = vmatpush1.msra.mxu0 %v2004
      %2078 = vmatprep.subr.mxu0 0.0
      %2079 = vmatpush1.msra.mxu0 %v2005
      %2080 = vmatprep.subr.mxu0 0.0
      %2081 = vmatpush1.msra.mxu0 %v2006
      %2082 = vmatprep.subr.mxu0 0.0
      %2083 = vmatpush1.msra.mxu0 %v2007
      %2084 = vmatprep.subr.mxu0 0.0
      %2085 = vmatpush1.msra.mxu0 %v2008
      %2086 = vmatprep.subr.mxu0 0.0
      %2087 = vmatpush1.msra.mxu0 %v2009
      %2088 = vmatprep.subr.mxu0 0.0
      %2089 = vmatpush1.msra.mxu0 %v2010
      %2090 = vmatprep.subr.mxu0 0.0
      %2091 = vmatpush1.msra.mxu0 %v2011
      %2092 = vmatprep.subr.mxu0 0.0
      %2093 = vmatpush1.msra.mxu0 %v2012
      %2094 = vmatprep.subr.mxu0 0.0
      %2095 = vmatpush1.msra.mxu0 %v2013
      %2096 = vmatprep.subr.mxu0 0.0
      %2097 = vmatpush1.msra.mxu0 %v2014
      %2098 = vmatprep.subr.mxu0 0.0
      %2099 = vmatpush1.msra.mxu0 %v2015
      %2100 = vmatprep.subr.mxu0 0.0
      %2101 = vmatpush1.msra.mxu0 %v2016
      %2102 = vmatprep.subr.mxu0 0.0
      %2103 = vmatpush1.msra.mxu0 %v2017
      %2104 = vmatprep.subr.mxu0 0.0
      %2105 = vmatpush1.msra.mxu0 %v2018
      %2106 = vmatprep.subr.mxu0 0.0
      %2107 = vmatpush1.msra.mxu0 %v2019
      %2108 = vmatprep.subr.mxu0 0.0
      %2109 = vmatpush1.msra.mxu0 %v2020
      %2110 = vmatprep.subr.mxu0 0.0
      %2111 = vmatpush1.msra.mxu0 %v2021
      %2112 = vmatprep.subr.mxu0 0.0
      %2113 = vmatpush1.msra.mxu0 %v2022
      %2114 = vmatprep.subr.mxu0 0.0
      %2115 = vmatpush1.msra.mxu0 %v2023
      %2116 = vmatprep.subr.mxu0 0.0
      %2117 = vmatpush1.msra.mxu0 %v2024
      %2118 = vmatprep.subr.mxu0 0.0
      %2119 = vmatpush1.msra.mxu0 %v2025
      %2120 = vmatprep.subr.mxu0 0.0
      %2121 = vmatpush1.msra.mxu0 %v2026
      %2122 = vmatprep.subr.mxu0 0.0
      %2123 = vmatpush1.msra.mxu0 %v2027
      %2124 = vmatprep.subr.mxu0 0.0
      %2125 = vmatpush1.msra.mxu0 %v2028
      %2126 = vmatprep.subr.mxu0 0.0
      %2127 = vmatpush1.msra.mxu0 %v2029
      %2128 = vmatprep.subr.mxu0 0.0
      %2129 = vmatpush1.msra.mxu0 %v2030
      %2130 = vmatprep.subr.mxu0 0.0
      %2131 = vmatpush1.msra.mxu0 %v2031
      %2132 = vmatprep.subr.mxu0 0.0
      %2133 = vmatpush1.msra.mxu0 %v2032
      %2134 = vmatprep.subr.mxu0 0.0
      %2135 = vmatpush1.msra.mxu0 %v2033
      %2136 = vmatprep.subr.mxu0 0.0
      %2137 = vmatpush1.msra.mxu0 %v2034
      %2138 = vmatprep.mubr.f32.mxu0 %v1996
      %2139 = vmatmul.mubr.f32.gmra.mrb[0].mxu0 %v1995
      %v2140 = vpop.f32.mrb[0].mxu0
      %v2141 = vadd.f32 %v2072, %v2140
      %v2142 = vpop.f32.mrb[0].mxu0
      %2143 = vmatprep.mubr.f32.mxu0 %v2000
      %2144 = vmatmul.mubr.f32.gmra.mrb[0].mxu0 %v1999
      %v2145 = vpop.f32.mrb[0].mxu0
      %v2146 = vadd.f32 %v2072, %v2145
      %v2147 = vpop.f32.mrb[0].mxu0
      %2148 = vdwg.mxu0
      %2149 = vmatprep.subr.mxu0 0.0
      %2150 = vmatpush1.msra.mxu0 %v2035
      %2151 = vmatprep.subr.mxu0 0.0
      %2152 = vmatpush1.msra.mxu0 %v2036
      %2153 = vmatprep.subr.mxu0 0.0
      %2154 = vmatpush1.msra.mxu0 %v2037
      %2155 = vmatprep.subr.mxu0 0.0
      %2156 = vmatpush1.msra.mxu0 %v2038
      %2157 = vmatprep.subr.mxu0 0.0
      %2158 = vmatpush1.msra.mxu0 %v2039
      %2159 = vmatprep.subr.mxu0 0.0
      %2160 = vmatpush1.msra.mxu0 %v2040
      %2161 = vmatprep.subr.mxu0 0.0
      %2162 = vmatpush1.msra.mxu0 %v2041
      %2163 = vmatprep.subr.mxu0 0.0
      %2164 = vmatpush1.msra.mxu0 %v2042
      %2165 = vmatprep.subr.mxu0 0.0
      %2166 = vmatpush1.msra.mxu0 %v2043
      %2167 = vmatprep.subr.mxu0 0.0
      %2168 = vmatpush1.msra.mxu0 %v2044
      %2169 = vmatprep.subr.mxu0 0.0
      %2170 = vmatpush1.msra.mxu0 %v2045
      %2171 = vmatprep.subr.mxu0 0.0
      %2172 = vmatpush1.msra.mxu0 %v2046
      %2173 = vmatprep.subr.mxu0 0.0
      %2174 = vmatpush1.msra.mxu0 %v2047
      %2175 = vmatprep.subr.mxu0 0.0
      %2176 = vmatpush1.msra.mxu0 %v2048
      %2177 = vmatprep.subr.mxu0 0.0
      %2178 = vmatpush1.msra.mxu0 %v2049
      %2179 = vmatprep.subr.mxu0 0.0
      %2180 = vmatpush1.msra.mxu0 %v2050
      %2181 = vmatprep.subr.mxu0 0.0
      %2182 = vmatpush1.msra.mxu0 %v2051
      %2183 = vmatprep.subr.mxu0 0.0
      %2184 = vmatpush1.msra.mxu0 %v2052
      %2185 = vmatprep.subr.mxu0 0.0
      %2186 = vmatpush1.msra.mxu0 %v2053
      %2187 = vmatprep.subr.mxu0 0.0
      %2188 = vmatpush1.msra.mxu0 %v2054
      %2189 = vmatprep.subr.mxu0 0.0
      %2190 = vmatpush1.msra.mxu0 %v2055
      %2191 = vmatprep.subr.mxu0 0.0
      %2192 = vmatpush1.msra.mxu0 %v2056
      %2193 = vmatprep.subr.mxu0 0.0
      %2194 = vmatpush1.msra.mxu0 %v2057
      %2195 = vmatprep.subr.mxu0 0.0
      %2196 = vmatpush1.msra.mxu0 %v2058
      %2197 = vmatprep.subr.mxu0 0.0
      %2198 = vmatpush1.msra.mxu0 %v2059
      %2199 = vmatprep.subr.mxu0 0.0
      %2200 = vmatpush1.msra.mxu0 %v2060
      %2201 = vmatprep.subr.mxu0 0.0
      %2202 = vmatpush1.msra.mxu0 %v2061
      %2203 = vmatprep.subr.mxu0 0.0
      %2204 = vmatpush1.msra.mxu0 %v2062
      %2205 = vmatprep.subr.mxu0 0.0
      %2206 = vmatpush1.msra.mxu0 %v2063
      %2207 = vmatprep.subr.mxu0 0.0
      %2208 = vmatpush1.msra.mxu0 %v2064
      %2209 = vmatprep.subr.mxu0 0.0
      %2210 = vmatpush1.msra.mxu0 %v2065
      %2211 = vmatprep.subr.mxu0 0.0
      %2212 = vmatpush1.msra.mxu0 %v2066
      %2213 = vmatprep.mubr.f32.mxu0 %v1998
      %2214 = vmatmul.mubr.f32.gmra.mrb[0].mxu0 %v1997
      %v2215 = vpop.f32.mrb[0].mxu0
      %v2216 = vadd.f32 %v2141, %v2215
      %v2217 = vpop.f32.mrb[0].mxu0
      %2218 = vmatprep.mubr.f32.mxu0 %v2002
      %2219 = vmatmul.mubr.f32.gmra.mrb[0].mxu0 %v2001
      %v2220 = vpop.f32.mrb[0].mxu0
      %v2221 = vadd.f32 %v2146, %v2220
      %v2222 = vpop.f32.mrb[0].mxu0
      %2223 = vdwg.mxu0
      %2224 = vst [vmem:[#allocation15] sm:$0xff] %v2216
      %2225 = vst [vmem:[#allocation15 + $0x8] sm:$0xff] %v2221
    $region65: #{tpu_custom_call.1} parent=1 // pred_fallthru
      _
    // Predicated region
    $region66: #{tpu_custom_call.1} parent=1 // pred_check
      _
    $region67: #{tpu_custom_call.1} parent=1 // pred_check_branch
      %2227 = sbr.rel (0) target = $region69
    $region68: #{tpu_custom_call.1} parent=1 // pred_region
      %s2229 = ssub.s32 256, 256
      %2230 = vsyncadd [#allocation5], %s2229
      %s2231 = sshll.u32 [#allocation15], 4
      %s2232 = int_to_ptr.vmem [resolvable:$true] %s2231
      %2237 = dma.vmem_to_hbm [thread:$0]  %s2232, 256, %s7, [#allocation5], 128, 128, 8
    $region69: #{tpu_custom_call.1} parent=1 // pred_fallthru
      _
    // Predicated region
    $region70: #{tpu_custom_call.1} parent=1 // pred_check
      _
    $region71: #{tpu_custom_call.1} parent=1 // pred_check_branch
      %2239 = sbr.rel (0) target = $region73
    $region72: #{tpu_custom_call.1} parent=1 // pred_region
      %2240 = dma.done [#allocation5], 256
    $region73: #{tpu_custom_call.1} parent=1 // pred_fallthru
      _
    %2241 = vsyncpa [#allocation4], 1
    %2242 = vsyncpa [#allocation7], 1
    %2243 = vsyncpa [#allocation10], 1
    %2244 = vsyncpa [#allocation13], 1
    %2245 = vsyncpa [#allocation5], 1

</llo_original>
